<compile_context>
chip_gen: v5e
topology: v5e:2x2
jax: 0.10.0
libtpu: 0.0.40
codegen_flags: <defaults>
</compile_context>

<pallas_src>
import functools

import jax
import jax.numpy as jnp
from jax import lax
from jax.experimental import pallas as pl
from jax.experimental.pallas import tpu as pltpu

E_CHAR = 50          # char embedding size (fixed by the module)
KERNEL_SIZE = 5      # Conv1d kernel width (fixed by the module)
EC_PAD = 64          # padded char-channel width used by the paired-tap path


def _round_up(x, m):
    return ((x + m - 1) // m) * m


def _default_pair_taps():
    """v6e/v7x (2x256^2 MXU) -> pair two conv taps per matmul; v5e/v4 and older
    (128-wide MXU) -> keep the single-tap (K=250, N=E) shape which already fits."""
    try:
        kind = jax.devices()[0].device_kind.lower()
    except Exception:
        return True
    return not any(tag in kind for tag in ("v2", "v3", "v4", "v5"))


def _char_cnn_highway_kernel(x_ref, wconv_ref, bconv_ref, whw_ref, bhw_ref,
                             out_ref, *, l_out, pair_taps):
    """One tile of TN word rows.

    pair_taps=False:
      x_ref  : (TN, ROW) bf16 with x[n, t*50 + c] = conv_in[n, c, t]
      wconv  : (250, E)  bf16, row = k*50 + c
    pair_taps=True:
      x_ref  : (TN, ROW) bf16 with x[n, t*64 + c] = conv_in[n, c, t]  (c >= 50 zero)
      wconv  : (384, 2E) bf16, cols [:E] = tap t weights, cols [E:] = tap t+1 weights
    bconv (1, E) f32, whw (E, 2E) bf16, bhw (1, 2E) f32, out (TN, E) bf16.
    """
    e_word = bconv_ref.shape[1]
    w_conv = wconv_ref[...]                       # loop-invariant, stays VMEM-resident

    if pair_taps:
        width = (KERNEL_SIZE + 1) * EC_PAD        # 384 lanes per paired window
        stride = 2 * EC_PAD                       # 128 -> every window start is aligned

        def pair_dot(start):
            win = x_ref[:, pl.ds(start, width)]   # load straight from the ref
            return jnp.dot(win, w_conv, preferred_element_type=jnp.float32)

        n_pairs = l_out // 2
        has_tail = (l_out % 2) == 1

        if n_pairs >= 1:
            c0 = pair_dot(0)
            m_run = jnp.maximum(c0[:, :e_word], c0[:, e_word:])   # init from pair 0
            if n_pairs > 1:
                def body(p, m):
                    start = pl.multiple_of(p * stride, 128)
                    c = pair_dot(start)
                    return jnp.maximum(m, jnp.maximum(c[:, :e_word], c[:, e_word:]))
                m_run = lax.fori_loop(1, n_pairs, body, m_run, unroll=True)
            if has_tail:
                # last (odd) tap: only the first e_word output columns are valid
                c = pair_dot((l_out - 1) * EC_PAD)                # static, 128-aligned
                m_run = jnp.maximum(m_run, c[:, :e_word])
        else:
            m_run = pair_dot(0)[:, :e_word]
    else:
        width = KERNEL_SIZE * E_CHAR              # 250

        def tap_dot(start):
            win = x_ref[:, pl.ds(start, width)]
            return jnp.dot(win, w_conv, preferred_element_type=jnp.float32)

        m_run = tap_dot(0)                        # init from tap 0
        if l_out > 1:
            def body(t, m):
                return jnp.maximum(m, tap_dot(t * E_CHAR))
            m_run = lax.fori_loop(1, l_out, body, m_run, unroll=True)

    # bias add + ReLU commute with the running max (bias is tap-independent, relu monotone)
    pooled = jnp.maximum(m_run + bconv_ref[...], 0.0)             # (TN, E) f32

    # Highway: fused proj/gate matmul (lane-dense 2E output), f32 epilogue.
    h = jnp.dot(pooled.astype(jnp.bfloat16), whw_ref[...],
                preferred_element_type=jnp.float32) + bhw_ref[...]
    proj = jnp.maximum(h[:, :e_word], 0.0)
    gate = jax.nn.sigmoid(h[:, e_word:])

    # TODO(synk): dropout(p=0.3) treated as identity (eval mode); training-mode
    # stochastic masking (pltpu.prng_*) not implemented.
    out_ref[...] = (gate * proj + (1.0 - gate) * pooled).astype(out_ref.dtype)


@functools.partial(jax.jit, static_argnames=("tile_n", "pair_taps"))
def _forward_impl(char_ids, params, *, tile_n, pair_taps):
    S, B, M = char_ids.shape
    if M < KERNEL_SIZE:
        raise ValueError(f"max_word_length={M} must be >= kernel_size={KERNEL_SIZE}")
    if tile_n % 16 != 0:
        raise ValueError("tile_n must be a multiple of 16")
    e_word = params["conv_w"].shape[0]
    N = S * B
    L = M - KERNEL_SIZE + 1

    # ---- XLA glue: one bf16 gather + one fused pad+transpose copy ----
    # TODO(synk): the fixed channel/time permutation still runs as an XLA copy pass;
    # folding it into the embedding gather (or doing it in-kernel) was not done here.
    emb = params["char_emb"].astype(jnp.bfloat16)[char_ids]       # (S, B, M, 50) bf16
    x_nch = emb.reshape(N, E_CHAR, M)        # exact `.contiguous().view(S*B, 50, M)`

    if pair_taps:
        # pad channels 50->64 and time so the last paired/tail window fits; even time
        # padding keeps the flattened row a multiple of 128 lanes.
        m_pad = _round_up(M + (1 if L % 2 == 1 else 0), 2)
        x_nch = jnp.pad(x_nch, ((0, 0), (0, EC_PAD - E_CHAR), (0, m_pad - M)))
        row_w = m_pad * EC_PAD
    else:
        row_w = _round_up(M * E_CHAR, 128)
    x = jnp.transpose(x_nch, (0, 2, 1)).reshape(N, -1)            # channels-last rows
    if x.shape[1] != row_w:
        x = jnp.pad(x, ((0, 0), (0, row_w - x.shape[1])))         # lane-dense padding

    # ---- tile the word dimension; keep >=2 blocks so both v7x TCs get work ----
    tn = min(tile_n, max(16, _round_up(-(-N // 2), 16)))
    n_blocks = pl.cdiv(N, tn)
    n_pad = n_blocks * tn
    if n_pad != N:
        x = jnp.pad(x, ((0, n_pad - N), (0, 0)))

    # ---- weight preprocessing (tiny, one-time) ----
    w_base = jnp.transpose(params["conv_w"], (2, 1, 0))           # (K, 50, E)
    if pair_taps:
        w_base = jnp.pad(w_base, ((0, 0), (0, EC_PAD - E_CHAR), (0, 0)))   # (K, 64, E)
        w_flat = w_base.reshape(KERNEL_SIZE * EC_PAD, e_word)              # (320, E)
        w_conv = jnp.zeros(((KERNEL_SIZE + 1) * EC_PAD, 2 * e_word), jnp.float32)
        w_conv = w_conv.at[:KERNEL_SIZE * EC_PAD, :e_word].set(w_flat)     # tap t
        w_conv = w_conv.at[EC_PAD:, e_word:].set(w_flat)                   # tap t+1
        w_conv = w_conv.astype(jnp.bfloat16)                               # (384, 2E)
    else:
        w_conv = w_base.reshape(KERNEL_SIZE * E_CHAR, e_word).astype(jnp.bfloat16)
    b_conv = params["conv_b"].reshape(1, e_word).astype(jnp.float32)
    w_hw = jnp.concatenate([params["proj_w"].T, params["gate_w"].T],
                           axis=1).astype(jnp.bfloat16)                    # (E, 2E)
    b_hw = jnp.concatenate([params["proj_b"], params["gate_b"]]
                           ).reshape(1, 2 * e_word).astype(jnp.float32)

    flops = int(2 * n_pad * L * KERNEL_SIZE * E_CHAR * e_word
                + 2 * n_pad * e_word * (2 * e_word))
    bytes_accessed = int(x.size * 2 + n_pad * e_word * 2
                         + w_conv.size * 2 + w_hw.size * 2
                         + (b_conv.size + b_hw.size) * 4)

    kernel = functools.partial(_char_cnn_highway_kernel, l_out=L, pair_taps=pair_taps)
    out = pl.pallas_call(
        kernel,
        out_shape=jax.ShapeDtypeStruct((n_pad, e_word), jnp.bfloat16),
        grid=(n_blocks,),
        in_specs=[
            pl.BlockSpec((tn, row_w), lambda i: (i, 0)),
            pl.BlockSpec(w_conv.shape, lambda i: (0, 0)),         # constant -> resident
            pl.BlockSpec((1, e_word), lambda i: (0, 0)),
            pl.BlockSpec((e_word, 2 * e_word), lambda i: (0, 0)),
            pl.BlockSpec((1, 2 * e_word), lambda i: (0, 0)),
        ],
        out_specs=pl.BlockSpec((tn, e_word), lambda i: (i, 0)),
        compiler_params=pltpu.CompilerParams(
            dimension_semantics=("parallel",),
            vmem_limit_bytes=32 * 1024 * 1024),
        cost_estimate=pl.CostEstimate(
            flops=flops, transcendentals=int(n_pad * e_word),
            bytes_accessed=bytes_accessed),
    )(x, w_conv, b_conv, w_hw, b_hw)

    return out[:N].reshape(S, B, e_word)


def model_embeddings_forward(char_ids, params, *, tile_n=512, pair_taps=None):
    """char_ids: int32 (sentence_length, batch_size, max_word_length)."""
    if pair_taps is None:
        pair_taps = _default_pair_taps()
    return _forward_impl(char_ids, params, tile_n=tile_n, pair_taps=bool(pair_taps))


def reference_forward(char_ids, params):
    """Pure-JAX fp32 reference mirroring the PyTorch forward (eval mode)."""
    S, B, M = char_ids.shape
    emb = params["char_emb"][char_ids]
    x = emb.reshape(S * B, E_CHAR, M)
    conv = jax.lax.conv_general_dilated(
        x, params["conv_w"], window_strides=(1,), padding="VALID",
        dimension_numbers=("NCH", "OIH", "NCH"))
    conv = conv + params["conv_b"][None, :, None]
    conv = jnp.maximum(conv, 0.0)
    pooled = jnp.max(conv, axis=-1)
    proj = jnp.maximum(pooled @ params["proj_w"].T + params["proj_b"], 0.0)
    gate = jax.nn.sigmoid(pooled @ params["gate_w"].T + params["gate_b"])
    hw = gate * proj + (1.0 - gate) * pooled
    return hw.reshape(S, B, -1)


def init_params(key, vocab_char_size, word_embed_size, pad_idx=0):
    ks = jax.random.split(key, 7)
    char_emb = 0.1 * jax.random.normal(ks[0], (vocab_char_size, E_CHAR), jnp.float32)
    char_emb = char_emb.at[pad_idx].set(0.0)  # padding_idx row is zero
    return {
        "char_emb": char_emb,
        "conv_w": 0.1 * jax.random.normal(ks[1], (word_embed_size, E_CHAR, KERNEL_SIZE), jnp.float32),
        "conv_b": 0.1 * jax.random.normal(ks[2], (word_embed_size,), jnp.float32),
        "proj_w": 0.1 * jax.random.normal(ks[3], (word_embed_size, word_embed_size), jnp.float32),
        "proj_b": 0.1 * jax.random.normal(ks[4], (word_embed_size,), jnp.float32),
        "gate_w": 0.1 * jax.random.normal(ks[5], (word_embed_size, word_embed_size), jnp.float32),
        "gate_b": 0.1 * jax.random.normal(ks[6], (word_embed_size,), jnp.float32),
    }


if __name__ == "__main__":
    key = jax.random.PRNGKey(0)
    k_param, k_ids = jax.random.split(key)

    sentence_length, batch_size, max_word_length = 8, 4, 21
    word_embed_size = 128          # lane-dense output (multiple of 128)
    vocab_char_size = 96           # len(vocab.char2id)

    params = init_params(k_param, vocab_char_size, word_embed_size, pad_idx=0)
    char_ids = jax.random.randint(
        k_ids, (sentence_length, batch_size, max_word_length), 0, vocab_char_size,
        dtype=jnp.int32)

    # N = S*B = 32 words -> tile cap gives tn=16 and 2 grid blocks (both v7x TCs busy)
    out = model_embeddings_forward(char_ids, params)
    out = jax.block_until_ready(out)

    ref = reference_forward(char_ids, params)
    assert out.shape == (sentence_length, batch_size, word_embed_size), out.shape
    max_err = float(jnp.max(jnp.abs(out.astype(jnp.float32) - ref)))
    # bf16 matmul inputs / bf16 output vs fp32 reference -> loosened tolerance
    assert jnp.allclose(out.astype(jnp.float32), ref, rtol=2e-2, atol=2e-2), max_err

    print("KERNEL_OK")
</pallas_src>

<mosaic_0001>
module attributes {stable_mosaic.version = 11 : i64} {
  func.func @_char_cnn_highway_kernel(%arg0: i32, %arg1: memref<16x1408xbf16, #tpu.memory_space<vmem>>, %arg2: memref<384x256xbf16, #tpu.memory_space<vmem>>, %arg3: memref<1x128xf32, #tpu.memory_space<vmem>>, %arg4: memref<128x256xbf16, #tpu.memory_space<vmem>>, %arg5: memref<1x256xf32, #tpu.memory_space<vmem>>, %arg6: memref<16x128xbf16, #tpu.memory_space<vmem>>) attributes {dimension_semantics = [#tpu.dimension_semantics<parallel>], iteration_bounds = array<i64: 2>, scalar_prefetch = 0 : i64, scratch_operands = 0 : i64, tpu.core_type = #tpu.core_type<tc>, window_params = [{transform_indices = @transform_0, window_bounds = array<i64: 16, 1408>}, {pipeline_mode = #tpu.pipeline_mode<synchronous>, transform_indices = @transform_1, window_bounds = array<i64: 384, 256>}, {pipeline_mode = #tpu.pipeline_mode<synchronous>, transform_indices = @transform_2, window_bounds = array<i64: 1, 128>}, {pipeline_mode = #tpu.pipeline_mode<synchronous>, transform_indices = @transform_3, window_bounds = array<i64: 128, 256>}, {pipeline_mode = #tpu.pipeline_mode<synchronous>, transform_indices = @transform_4, window_bounds = array<i64: 1, 256>}, {transform_indices = @transform_5, window_bounds = array<i64: 16, 128>}]} {
    %c0 = arith.constant 0 : index
    %c0_0 = arith.constant 0 : index
    %0 = vector.load %arg2[%c0, %c0_0] : memref<384x256xbf16, #tpu.memory_space<vmem>>, vector<384x256xbf16>
    %c0_1 = arith.constant 0 : index
    %c0_2 = arith.constant 0 : index
    %1 = vector.load %arg1[%c0_1, %c0_2] : memref<16x1408xbf16, #tpu.memory_space<vmem>>, vector<16x384xbf16>
    %cst = arith.constant dense<0.000000e+00> : vector<16x256xf32>
    %2 = tpu.matmul %1, %0, %cst {dimension_numbers = #tpu.dot_dimension_numbers<[1], [0], [0], [1], [0, 0, 1, 1], [], []>} : vector<16x384xbf16>, vector<384x256xbf16>, vector<16x256xf32> -> vector<16x256xf32>
    %3 = vector.extract_strided_slice %2 {offsets = [0, 0], sizes = [16, 128], strides = [1, 1]} : vector<16x256xf32> to vector<16x128xf32>
    %4 = vector.extract_strided_slice %2 {offsets = [0, 128], sizes = [16, 128], strides = [1, 1]} : vector<16x256xf32> to vector<16x128xf32>
    %5 = arith.maximumf %3, %4 : vector<16x128xf32>
    %c1_i32 = arith.constant 1 : i32
    %c128_i32 = arith.constant 128 : i32
    %6 = arith.muli %c1_i32, %c128_i32 : i32
    %7 = tpu.assume_multiple %6, 128 : i32
    %c0_3 = arith.constant 0 : index
    %8 = arith.index_cast %7 : i32 to index
    %9 = vector.load %arg1[%c0_3, %8] : memref<16x1408xbf16, #tpu.memory_space<vmem>>, vector<16x384xbf16>
    %cst_4 = arith.constant dense<0.000000e+00> : vector<16x256xf32>
    %10 = tpu.matmul %9, %0, %cst_4 {dimension_numbers = #tpu.dot_dimension_numbers<[1], [0], [0], [1], [0, 0, 1, 1], [], []>} : vector<16x384xbf16>, vector<384x256xbf16>, vector<16x256xf32> -> vector<16x256xf32>
    %11 = vector.extract_strided_slice %10 {offsets = [0, 0], sizes = [16, 128], strides = [1, 1]} : vector<16x256xf32> to vector<16x128xf32>
    %12 = vector.extract_strided_slice %10 {offsets = [0, 128], sizes = [16, 128], strides = [1, 1]} : vector<16x256xf32> to vector<16x128xf32>
    %13 = arith.maximumf %11, %12 : vector<16x128xf32>
    %14 = arith.maximumf %5, %13 : vector<16x128xf32>
    %c2_i32 = arith.constant 2 : i32
    %c128_i32_5 = arith.constant 128 : i32
    %15 = arith.muli %c2_i32, %c128_i32_5 : i32
    %16 = tpu.assume_multiple %15, 128 : i32
    %c0_6 = arith.constant 0 : index
    %17 = arith.index_cast %16 : i32 to index
    %18 = vector.load %arg1[%c0_6, %17] : memref<16x1408xbf16, #tpu.memory_space<vmem>>, vector<16x384xbf16>
    %cst_7 = arith.constant dense<0.000000e+00> : vector<16x256xf32>
    %19 = tpu.matmul %18, %0, %cst_7 {dimension_numbers = #tpu.dot_dimension_numbers<[1], [0], [0], [1], [0, 0, 1, 1], [], []>} : vector<16x384xbf16>, vector<384x256xbf16>, vector<16x256xf32> -> vector<16x256xf32>
    %20 = vector.extract_strided_slice %19 {offsets = [0, 0], sizes = [16, 128], strides = [1, 1]} : vector<16x256xf32> to vector<16x128xf32>
    %21 = vector.extract_strided_slice %19 {offsets = [0, 128], sizes = [16, 128], strides = [1, 1]} : vector<16x256xf32> to vector<16x128xf32>
    %22 = arith.maximumf %20, %21 : vector<16x128xf32>
    %23 = arith.maximumf %14, %22 : vector<16x128xf32>
    %c3_i32 = arith.constant 3 : i32
    %c128_i32_8 = arith.constant 128 : i32
    %24 = arith.muli %c3_i32, %c128_i32_8 : i32
    %25 = tpu.assume_multiple %24, 128 : i32
    %c0_9 = arith.constant 0 : index
    %26 = arith.index_cast %25 : i32 to index
    %27 = vector.load %arg1[%c0_9, %26] : memref<16x1408xbf16, #tpu.memory_space<vmem>>, vector<16x384xbf16>
    %cst_10 = arith.constant dense<0.000000e+00> : vector<16x256xf32>
    %28 = tpu.matmul %27, %0, %cst_10 {dimension_numbers = #tpu.dot_dimension_numbers<[1], [0], [0], [1], [0, 0, 1, 1], [], []>} : vector<16x384xbf16>, vector<384x256xbf16>, vector<16x256xf32> -> vector<16x256xf32>
    %29 = vector.extract_strided_slice %28 {offsets = [0, 0], sizes = [16, 128], strides = [1, 1]} : vector<16x256xf32> to vector<16x128xf32>
    %30 = vector.extract_strided_slice %28 {offsets = [0, 128], sizes = [16, 128], strides = [1, 1]} : vector<16x256xf32> to vector<16x128xf32>
    %31 = arith.maximumf %29, %30 : vector<16x128xf32>
    %32 = arith.maximumf %23, %31 : vector<16x128xf32>
    %c4_i32 = arith.constant 4 : i32
    %c128_i32_11 = arith.constant 128 : i32
    %33 = arith.muli %c4_i32, %c128_i32_11 : i32
    %34 = tpu.assume_multiple %33, 128 : i32
    %c0_12 = arith.constant 0 : index
    %35 = arith.index_cast %34 : i32 to index
    %36 = vector.load %arg1[%c0_12, %35] : memref<16x1408xbf16, #tpu.memory_space<vmem>>, vector<16x384xbf16>
    %cst_13 = arith.constant dense<0.000000e+00> : vector<16x256xf32>
    %37 = tpu.matmul %36, %0, %cst_13 {dimension_numbers = #tpu.dot_dimension_numbers<[1], [0], [0], [1], [0, 0, 1, 1], [], []>} : vector<16x384xbf16>, vector<384x256xbf16>, vector<16x256xf32> -> vector<16x256xf32>
    %38 = vector.extract_strided_slice %37 {offsets = [0, 0], sizes = [16, 128], strides = [1, 1]} : vector<16x256xf32> to vector<16x128xf32>
    %39 = vector.extract_strided_slice %37 {offsets = [0, 128], sizes = [16, 128], strides = [1, 1]} : vector<16x256xf32> to vector<16x128xf32>
    %40 = arith.maximumf %38, %39 : vector<16x128xf32>
    %41 = arith.maximumf %32, %40 : vector<16x128xf32>
    %c5_i32 = arith.constant 5 : i32
    %c128_i32_14 = arith.constant 128 : i32
    %42 = arith.muli %c5_i32, %c128_i32_14 : i32
    %43 = tpu.assume_multiple %42, 128 : i32
    %c0_15 = arith.constant 0 : index
    %44 = arith.index_cast %43 : i32 to index
    %45 = vector.load %arg1[%c0_15, %44] : memref<16x1408xbf16, #tpu.memory_space<vmem>>, vector<16x384xbf16>
    %cst_16 = arith.constant dense<0.000000e+00> : vector<16x256xf32>
    %46 = tpu.matmul %45, %0, %cst_16 {dimension_numbers = #tpu.dot_dimension_numbers<[1], [0], [0], [1], [0, 0, 1, 1], [], []>} : vector<16x384xbf16>, vector<384x256xbf16>, vector<16x256xf32> -> vector<16x256xf32>
    %47 = vector.extract_strided_slice %46 {offsets = [0, 0], sizes = [16, 128], strides = [1, 1]} : vector<16x256xf32> to vector<16x128xf32>
    %48 = vector.extract_strided_slice %46 {offsets = [0, 128], sizes = [16, 128], strides = [1, 1]} : vector<16x256xf32> to vector<16x128xf32>
    %49 = arith.maximumf %47, %48 : vector<16x128xf32>
    %50 = arith.maximumf %41, %49 : vector<16x128xf32>
    %c6_i32 = arith.constant 6 : i32
    %c128_i32_17 = arith.constant 128 : i32
    %51 = arith.muli %c6_i32, %c128_i32_17 : i32
    %52 = tpu.assume_multiple %51, 128 : i32
    %c0_18 = arith.constant 0 : index
    %53 = arith.index_cast %52 : i32 to index
    %54 = vector.load %arg1[%c0_18, %53] : memref<16x1408xbf16, #tpu.memory_space<vmem>>, vector<16x384xbf16>
    %cst_19 = arith.constant dense<0.000000e+00> : vector<16x256xf32>
    %55 = tpu.matmul %54, %0, %cst_19 {dimension_numbers = #tpu.dot_dimension_numbers<[1], [0], [0], [1], [0, 0, 1, 1], [], []>} : vector<16x384xbf16>, vector<384x256xbf16>, vector<16x256xf32> -> vector<16x256xf32>
    %56 = vector.extract_strided_slice %55 {offsets = [0, 0], sizes = [16, 128], strides = [1, 1]} : vector<16x256xf32> to vector<16x128xf32>
    %57 = vector.extract_strided_slice %55 {offsets = [0, 128], sizes = [16, 128], strides = [1, 1]} : vector<16x256xf32> to vector<16x128xf32>
    %58 = arith.maximumf %56, %57 : vector<16x128xf32>
    %59 = arith.maximumf %50, %58 : vector<16x128xf32>
    %c7_i32 = arith.constant 7 : i32
    %c128_i32_20 = arith.constant 128 : i32
    %60 = arith.muli %c7_i32, %c128_i32_20 : i32
    %61 = tpu.assume_multiple %60, 128 : i32
    %c0_21 = arith.constant 0 : index
    %62 = arith.index_cast %61 : i32 to index
    %63 = vector.load %arg1[%c0_21, %62] : memref<16x1408xbf16, #tpu.memory_space<vmem>>, vector<16x384xbf16>
    %cst_22 = arith.constant dense<0.000000e+00> : vector<16x256xf32>
    %64 = tpu.matmul %63, %0, %cst_22 {dimension_numbers = #tpu.dot_dimension_numbers<[1], [0], [0], [1], [0, 0, 1, 1], [], []>} : vector<16x384xbf16>, vector<384x256xbf16>, vector<16x256xf32> -> vector<16x256xf32>
    %65 = vector.extract_strided_slice %64 {offsets = [0, 0], sizes = [16, 128], strides = [1, 1]} : vector<16x256xf32> to vector<16x128xf32>
    %66 = vector.extract_strided_slice %64 {offsets = [0, 128], sizes = [16, 128], strides = [1, 1]} : vector<16x256xf32> to vector<16x128xf32>
    %67 = arith.maximumf %65, %66 : vector<16x128xf32>
    %68 = arith.maximumf %59, %67 : vector<16x128xf32>
    %c7_i32_23 = arith.constant 7 : i32
    %c0_24 = arith.constant 0 : index
    %c1024 = arith.constant 1024 : index
    %69 = vector.load %arg1[%c0_24, %c1024] : memref<16x1408xbf16, #tpu.memory_space<vmem>>, vector<16x384xbf16>
    %cst_25 = arith.constant dense<0.000000e+00> : vector<16x256xf32>
    %70 = tpu.matmul %69, %0, %cst_25 {dimension_numbers = #tpu.dot_dimension_numbers<[1], [0], [0], [1], [0, 0, 1, 1], [], []>} : vector<16x384xbf16>, vector<384x256xbf16>, vector<16x256xf32> -> vector<16x256xf32>
    %71 = vector.extract_strided_slice %70 {offsets = [0, 0], sizes = [16, 128], strides = [1, 1]} : vector<16x256xf32> to vector<16x128xf32>
    %72 = arith.maximumf %68, %71 : vector<16x128xf32>
    %c0_26 = arith.constant 0 : index
    %c0_27 = arith.constant 0 : index
    %73 = vector.load %arg3[%c0_26, %c0_27] : memref<1x128xf32, #tpu.memory_space<vmem>>, vector<1x128xf32>
    %74 = vector.broadcast %73 : vector<1x128xf32> to vector<16x128xf32>
    %75 = arith.addf %72, %74 : vector<16x128xf32>
    %cst_28 = arith.constant 0.000000e+00 : f32
    %76 = vector.broadcast %cst_28 : f32 to vector<16x128xf32>
    %77 = arith.maximumf %75, %76 : vector<16x128xf32>
    %78 = arith.truncf %77 : vector<16x128xf32> to vector<16x128xbf16>
    %c0_29 = arith.constant 0 : index
    %c0_30 = arith.constant 0 : index
    %79 = vector.load %arg4[%c0_29, %c0_30] : memref<128x256xbf16, #tpu.memory_space<vmem>>, vector<128x256xbf16>
    %cst_31 = arith.constant dense<0.000000e+00> : vector<16x256xf32>
    %80 = tpu.matmul %78, %79, %cst_31 {dimension_numbers = #tpu.dot_dimension_numbers<[1], [0], [0], [1], [0, 0, 1, 1], [], []>} : vector<16x128xbf16>, vector<128x256xbf16>, vector<16x256xf32> -> vector<16x256xf32>
    %c0_32 = arith.constant 0 : index
    %c0_33 = arith.constant 0 : index
    %81 = vector.load %arg5[%c0_32, %c0_33] : memref<1x256xf32, #tpu.memory_space<vmem>>, vector<1x256xf32>
    %82 = vector.broadcast %81 : vector<1x256xf32> to vector<16x256xf32>
    %83 = arith.addf %80, %82 : vector<16x256xf32>
    %84 = vector.extract_strided_slice %83 {offsets = [0, 0], sizes = [16, 128], strides = [1, 1]} : vector<16x256xf32> to vector<16x128xf32>
    %cst_34 = arith.constant 0.000000e+00 : f32
    %85 = vector.broadcast %cst_34 : f32 to vector<16x128xf32>
    %86 = arith.maximumf %84, %85 : vector<16x128xf32>
    %87 = vector.extract_strided_slice %83 {offsets = [0, 128], sizes = [16, 128], strides = [1, 1]} : vector<16x256xf32> to vector<16x128xf32>
    %88 = arith.negf %87 : vector<16x128xf32>
    %89 = math.exp %88 : vector<16x128xf32>
    %cst_35 = arith.constant 1.000000e+00 : f32
    %90 = vector.broadcast %cst_35 : f32 to vector<16x128xf32>
    %91 = arith.addf %90, %89 : vector<16x128xf32>
    %92 = arith.divf %90, %91 : vector<16x128xf32>
    %93 = arith.mulf %92, %86 : vector<16x128xf32>
    %cst_36 = arith.constant 1.000000e+00 : f32
    %94 = vector.broadcast %cst_36 : f32 to vector<16x128xf32>
    %95 = arith.subf %94, %92 : vector<16x128xf32>
    %96 = arith.mulf %95, %77 : vector<16x128xf32>
    %97 = arith.addf %93, %96 : vector<16x128xf32>
    %98 = arith.truncf %97 : vector<16x128xf32> to vector<16x128xbf16>
    %c0_37 = arith.constant 0 : index
    %c0_38 = arith.constant 0 : index
    %99 = vector.load %arg6[%c0_37, %c0_38] : memref<16x128xbf16, #tpu.memory_space<vmem>>, vector<16x128xbf16>
    tpu.vector_store %arg6[%c0_37, %c0_38], %98 {strides = array<i32>} : memref<16x128xbf16, #tpu.memory_space<vmem>>, vector<16x128xbf16>,
    return
  }
  func.func @transform_0(%arg0: i32) -> (i32, i32) {
    %c0_i32 = arith.constant 0 : i32
    %c0_i32_0 = arith.constant 0 : i32
    return %arg0, %c0_i32 : i32, i32
  }
  func.func @transform_1(%arg0: i32) -> (i32, i32) {
    %c0_i32 = arith.constant 0 : i32
    %c0_i32_0 = arith.constant 0 : i32
    %c0_i32_1 = arith.constant 0 : i32
    return %c0_i32, %c0_i32_0 : i32, i32
  }
  func.func @transform_2(%arg0: i32) -> (i32, i32) {
    %c0_i32 = arith.constant 0 : i32
    %c0_i32_0 = arith.constant 0 : i32
    %c0_i32_1 = arith.constant 0 : i32
    return %c0_i32, %c0_i32_0 : i32, i32
  }
  func.func @transform_3(%arg0: i32) -> (i32, i32) {
    %c0_i32 = arith.constant 0 : i32
    %c0_i32_0 = arith.constant 0 : i32
    %c0_i32_1 = arith.constant 0 : i32
    return %c0_i32, %c0_i32_0 : i32, i32
  }
  func.func @transform_4(%arg0: i32) -> (i32, i32) {
    %c0_i32 = arith.constant 0 : i32
    %c0_i32_0 = arith.constant 0 : i32
    %c0_i32_1 = arith.constant 0 : i32
    return %c0_i32, %c0_i32_0 : i32, i32
  }
  func.func @transform_5(%arg0: i32) -> (i32, i32) {
    %c0_i32 = arith.constant 0 : i32
    %c0_i32_0 = arith.constant 0 : i32
    return %arg0, %c0_i32 : i32, i32
  }
}

</mosaic_0001>

<llo_original>
// kernel: _forward_impl.1
$region0: #{_forward_impl.1}
  #allocation0 [shape = 'u32[]', space=smem, size = 0x4, offset = 0x4, fixed_abs, tag = 'smem constant byte address 0x4 - core index']
  #allocation1 [shape = 'u32[72,128]{1,0:T(1,128)}', space=vmem, size = 0x9000, scoped, tag = 'internal scratch']
  %s0 = inlined_call_operand.vmem [shape: bf16[32,1408], index: 0, kind: input, shape index: {}]
  %s1 = inlined_call_operand.vmem [shape: bf16[384,256], index: 1, kind: input, shape index: {}]
  %s2 = inlined_call_operand.vmem [shape: f32[1,128], index: 2, kind: input, shape index: {}]
  %s3 = inlined_call_operand.vmem [shape: bf16[128,256], index: 3, kind: input, shape index: {}]
  %s4 = inlined_call_operand.vmem [shape: f32[1,256], index: 4, kind: input, shape index: {}]
  %s5 = inlined_call_operand.hbm [shape: bf16[32,128], index: 5, kind: output, shape index: {}]
  %s6 = sld [smem:[#allocation0]]
  $region53: #{_forward_impl.1} parent=0
    _
  %s8 = ssub.s32 1, %s6
  %s9 = scalar_select 0, %s8, %s6
  $region1: #{_forward_impl.1} parent=0
    #allocation2 [shape = 'u8[8192]{0}', space=vmem, size = 0x2000, scoped, tag = 'output window, operand 0']
    #allocation3 [shape = 's32[2]{0}', space=sflag, size = 0x8, scoped, tag = 'scoped memory for _forward_impl.1']
    %10 = vsyncpa [#allocation3], 0
    %s11 = scalar_lea.sflag [#allocation3], 1
    %12 = vsyncpa %s11, 0
    loop: start=0, step=1, limit=4
    $region2: #{_forward_impl.1} parent=1 // loop_pre_header
      _
    $region3: #{_forward_impl.1} parent=1 // loop_header
      %s14 = sphi 0, %s18
      %p15 = scmp.ge.s32.totalorder %s14, 4
      %s24 = sphi 0, %s26
      %s27 = sphi 0, %s24
      %s28 = sphi 0, %s27
      %s44 = sphi 0, %s28
      %s48 = sphi 0, %s48
      %s50 = sphi 0, %s48
      %s51 = sphi 0, %s50
      %s65 = sphi 0, %s51
      %s69 = sphi 0, %s69
      %s71 = sphi 0, %s69
      %s72 = sphi 0, %s71
      %s86 = sphi 0, %s72
      %s90 = sphi 0, %s90
      %s92 = sphi 0, %s90
      %s93 = sphi 0, %s92
      %s107 = sphi 0, %s93
      %s111 = sphi 0, %s111
      %s113 = sphi 0, %s111
      %s114 = sphi 0, %s113
      %s128 = sphi 0, %s114
      %s134 = sphi 0, %s136
      %s137 = sphi 0, %s134
      %s138 = sphi 0, %s137
      %s154 = sphi 0, %s138
    $region4: #{_forward_impl.1} parent=1 // loop_header_branch
      %17 = sbr.rel (%p15) target = $region8
    $region5: #{_forward_impl.1} parent=1 // loop_body
      %s19 = ssub.s32 %s14, 1
      %s20 = ssub.s32 %s14, 2
      %s21 = sadd.s32 %s14, 1
      %s22 = ssub.s32 %s14, %s21
      %p23 = scmp.eq.s32.totalorder %s22, 0
      %s25 = sadd.s32 %s24, 1
      %s26 = scalar_select %p23, %s24, %s25
      %p29 = pneg %p23
      %p30 = scmp.eq.s32.totalorder %s14, 1
      %p31 = por %p29, %p30
      %p32 = scmp.ne.s32.totalorder %s24, %s27
      %p33 = scmp.eq.s32.totalorder %s14, 0
      %p34 = por %p32, %p33
      %p35 = scmp.ne.s32.totalorder %s24, %s27
      %p36 = scmp.eq.s32.totalorder %s19, 1
      %p37 = por %p35, %p36
      %p38 = scmp.ne.s32.totalorder %s27, %s28
      %p39 = scmp.eq.s32.totalorder %s19, 0
      %p40 = por %p38, %p39
      %p41 = scmp.ne.s32.totalorder %s27, %s28
      %p42 = scmp.eq.s32.totalorder %s20, 1
      %p43 = por %p41, %p42
      %p45 = scmp.ne.s32.totalorder %s28, %s44
      %p46 = scmp.eq.s32.totalorder %s20, 0
      %p47 = por %p45, %p46
      %s49 = sadd.s32 %s48, 1
      %p52 = scmp.eq.s32.totalorder %s14, 1
      %p53 = scmp.ne.s32.totalorder %s48, %s50
      %p54 = scmp.eq.s32.totalorder %s14, 0
      %p55 = por %p53, %p54
      %p56 = scmp.ne.s32.totalorder %s48, %s50
      %p57 = scmp.eq.s32.totalorder %s19, 1
      %p58 = por %p56, %p57
      %p59 = scmp.ne.s32.totalorder %s50, %s51
      %p60 = scmp.eq.s32.totalorder %s19, 0
      %p61 = por %p59, %p60
      %p62 = scmp.ne.s32.totalorder %s50, %s51
      %p63 = scmp.eq.s32.totalorder %s20, 1
      %p64 = por %p62, %p63
      %p66 = scmp.ne.s32.totalorder %s51, %s65
      %p67 = scmp.eq.s32.totalorder %s20, 0
      %p68 = por %p66, %p67
      %s70 = sadd.s32 %s69, 1
      %p73 = scmp.eq.s32.totalorder %s14, 1
      %p74 = scmp.ne.s32.totalorder %s69, %s71
      %p75 = scmp.eq.s32.totalorder %s14, 0
      %p76 = por %p74, %p75
      %p77 = scmp.ne.s32.totalorder %s69, %s71
      %p78 = scmp.eq.s32.totalorder %s19, 1
      %p79 = por %p77, %p78
      %p80 = scmp.ne.s32.totalorder %s71, %s72
      %p81 = scmp.eq.s32.totalorder %s19, 0
      %p82 = por %p80, %p81
      %p83 = scmp.ne.s32.totalorder %s71, %s72
      %p84 = scmp.eq.s32.totalorder %s20, 1
      %p85 = por %p83, %p84
      %p87 = scmp.ne.s32.totalorder %s72, %s86
      %p88 = scmp.eq.s32.totalorder %s20, 0
      %p89 = por %p87, %p88
      %s91 = sadd.s32 %s90, 1
      %p94 = scmp.eq.s32.totalorder %s14, 1
      %p95 = scmp.ne.s32.totalorder %s90, %s92
      %p96 = scmp.eq.s32.totalorder %s14, 0
      %p97 = por %p95, %p96
      %p98 = scmp.ne.s32.totalorder %s90, %s92
      %p99 = scmp.eq.s32.totalorder %s19, 1
      %p100 = por %p98, %p99
      %p101 = scmp.ne.s32.totalorder %s92, %s93
      %p102 = scmp.eq.s32.totalorder %s19, 0
      %p103 = por %p101, %p102
      %p104 = scmp.ne.s32.totalorder %s92, %s93
      %p105 = scmp.eq.s32.totalorder %s20, 1
      %p106 = por %p104, %p105
      %p108 = scmp.ne.s32.totalorder %s93, %s107
      %p109 = scmp.eq.s32.totalorder %s20, 0
      %p110 = por %p108, %p109
      %s112 = sadd.s32 %s111, 1
      %p115 = scmp.eq.s32.totalorder %s14, 1
      %p116 = scmp.ne.s32.totalorder %s111, %s113
      %p117 = scmp.eq.s32.totalorder %s14, 0
      %p118 = por %p116, %p117
      %p119 = scmp.ne.s32.totalorder %s111, %s113
      %p120 = scmp.eq.s32.totalorder %s19, 1
      %p121 = por %p119, %p120
      %p122 = scmp.ne.s32.totalorder %s113, %s114
      %p123 = scmp.eq.s32.totalorder %s19, 0
      %p124 = por %p122, %p123
      %p125 = scmp.ne.s32.totalorder %s113, %s114
      %p126 = scmp.eq.s32.totalorder %s20, 1
      %p127 = por %p125, %p126
      %p129 = scmp.ne.s32.totalorder %s114, %s128
      %p130 = scmp.eq.s32.totalorder %s20, 0
      %p131 = por %p129, %p130
      %s132 = ssub.s32 %s14, %s21
      %p133 = scmp.eq.s32.totalorder %s132, 0
      %s135 = sadd.s32 %s134, 1
      %s136 = scalar_select %p133, %s134, %s135
      %p139 = pneg %p133
      %p140 = scmp.eq.s32.totalorder %s14, 1
      %p141 = por %p139, %p140
      %p142 = scmp.ne.s32.totalorder %s134, %s137
      %p143 = scmp.eq.s32.totalorder %s14, 0
      %p144 = por %p142, %p143
      %p145 = scmp.ne.s32.totalorder %s134, %s137
      %p146 = scmp.eq.s32.totalorder %s19, 1
      %p147 = por %p145, %p146
      %p148 = scmp.ne.s32.totalorder %s137, %s138
      %p149 = scmp.eq.s32.totalorder %s19, 0
      %p150 = por %p148, %p149
      %p151 = scmp.ne.s32.totalorder %s137, %s138
      %p152 = scmp.eq.s32.totalorder %s20, 1
      %p153 = por %p151, %p152
      %p155 = scmp.ne.s32.totalorder %s138, %s154
      %p156 = scmp.eq.s32.totalorder %s20, 0
      %p157 = por %p155, %p156
      %p158 = scmp.le.s32.totalorder 1, %s14
      %p159 = scmp.lt.s32.totalorder %s14, 3
      %p160 = pnand %p158, %p159
      %p161 = pneg %p160
      // Predicated region
      $region9: #{_forward_impl.1} parent=5 // pred_check
        _
      $region10: #{_forward_impl.1} parent=5 // pred_check_branch
        %163 = sbr.rel (%p160) target = $region12
      $region11: #{_forward_impl.1} parent=5 // pred_region
        %s164 = ssub.s32 %s14, 1
        // Predicated region
        $region13: #{_forward_impl.1} parent=11 // pred_check
          %p165 = pneg %p61
        $region14: #{_forward_impl.1} parent=11 // pred_check_branch
          %167 = sbr.rel (%p165) target = $region16
        $region15: #{_forward_impl.1} parent=11 // pred_region
          _
        $region16: #{_forward_impl.1} parent=11 // pred_fallthru
          _
        // Predicated region
        $region17: #{_forward_impl.1} parent=11 // pred_check
          %p168 = pneg %p82
        $region18: #{_forward_impl.1} parent=11 // pred_check_branch
          %170 = sbr.rel (%p168) target = $region20
        $region19: #{_forward_impl.1} parent=11 // pred_region
          _
        $region20: #{_forward_impl.1} parent=11 // pred_fallthru
          _
        // Predicated region
        $region21: #{_forward_impl.1} parent=11 // pred_check
          %p171 = pneg %p103
        $region22: #{_forward_impl.1} parent=11 // pred_check_branch
          %173 = sbr.rel (%p171) target = $region24
        $region23: #{_forward_impl.1} parent=11 // pred_region
          _
        $region24: #{_forward_impl.1} parent=11 // pred_fallthru
          _
        // Predicated region
        $region25: #{_forward_impl.1} parent=11 // pred_check
          %p174 = pneg %p124
        $region26: #{_forward_impl.1} parent=11 // pred_check_branch
          %176 = sbr.rel (%p174) target = $region28
        $region27: #{_forward_impl.1} parent=11 // pred_region
          _
        $region28: #{_forward_impl.1} parent=11 // pred_fallthru
          _
      $region12: #{_forward_impl.1} parent=5 // pred_fallthru
        _
      %p177 = scmp.lt.s32.totalorder %s14, 2
      // Predicated region
      $region29: #{_forward_impl.1} parent=5 // pred_check
        %p178 = pneg %p177
      $region30: #{_forward_impl.1} parent=5 // pred_check_branch
        %180 = sbr.rel (%p178) target = $region32
      $region31: #{_forward_impl.1} parent=5 // pred_region
        // Predicated region
        $region33: #{_forward_impl.1} parent=31 // pred_check
          %p181 = pneg %p34
        $region34: #{_forward_impl.1} parent=31 // pred_check_branch
          %183 = sbr.rel (%p181) target = $region36
        $region35: #{_forward_impl.1} parent=31 // pred_region
          %s184 = smul.u32 2, %s14
          %p185 = scmp.lt.s32.totalorder %s184, 3
          %s186 = scalar_select %p185, %s184, 3
          %s187 = smul.addr %s186, 11
          %s188 = smul.addr %s187, 4
          %s189 = scalar_lea.vmem %s0, %s188
          %s190 = smul.u32 2, %s14
        $region36: #{_forward_impl.1} parent=31 // pred_fallthru
          _
      $region32: #{_forward_impl.1} parent=5 // pred_fallthru
        _
      %p191 = scmp.le.s32.totalorder 1, %s14
      %p192 = scmp.lt.s32.totalorder %s14, 3
      %p193 = pnand %p191, %p192
      %p194 = pneg %p193
      // Predicated region
      $region37: #{_forward_impl.1} parent=5 // pred_check
        _
      $region38: #{_forward_impl.1} parent=5 // pred_check_branch
        %196 = sbr.rel (%p193) target = $region40
      $region39: #{_forward_impl.1} parent=5 // pred_region
        %s197 = ssub.s32 %s14, 1
        %s198 = smul.u32 2, %s19
        %p199 = scmp.lt.s32.totalorder %s198, 3
        %s200 = scalar_select %p199, %s198, 3
        %s201 = smul.addr %s200, 11
        %s202 = smul.addr %s201, 4
        %s203 = scalar_lea.vmem %s0, %s202
        %p204 = pneg %p40
        %p205 = pneg %p37
        %p206 = pneg %p61
        %p207 = pneg %p58
        %p208 = pneg %p82
        %p209 = pneg %p79
        %p210 = pneg %p103
        %p211 = pneg %p100
        %p212 = pneg %p124
        %p213 = pneg %p121
        %p214 = pneg %p150
        %p215 = pneg %p147
        %s216 = sand.u32 %s137, 1
        %s217 = scalar_lea.sflag [#allocation3], %s216
        %s218 = sand.u32 %s137, 1
        %s219 = smul.addr %s218, 8
        %s220 = scalar_lea.vmem [#allocation2], %s219
        %s221 = smul.u32 2, %s19
        %p222 = scmp.lt.s32.totalorder %s221, 3
        %s223 = scalar_select %p222, %s221, 3
        %s224 = smul.addr %s223, 11
        %s225 = smul.addr %s224, 4
        %s226 = scalar_lea.vmem %s0, %s225
        %s227 = smul.u32 2, %s19
        %s228 = smul.u32 2, %s19
        %v229 = vld [vmem:[%s1] sm:$0xff]
        %v230 = vld [vmem:[%s1 + $0x8] sm:$0xff]
        %v231 = vld [vmem:[%s1 + $0x10] sm:$0xff]
        %v232 = vld [vmem:[%s1 + $0x18] sm:$0xff]
        %v233 = vld [vmem:[%s1 + $0x20] sm:$0xff]
        %v234 = vld [vmem:[%s1 + $0x28] sm:$0xff]
        %v235 = vld [vmem:[%s1 + $0x30] sm:$0xff]
        %v236 = vld [vmem:[%s1 + $0x38] sm:$0xff]
        %v237 = vld [vmem:[%s1 + $0x40] sm:$0xff]
        %v238 = vld [vmem:[%s1 + $0x48] sm:$0xff]
        %v239 = vld [vmem:[%s1 + $0x50] sm:$0xff]
        %v240 = vld [vmem:[%s1 + $0x58] sm:$0xff]
        %v241 = vld [vmem:[%s1 + $0x60] sm:$0xff]
        %v242 = vld [vmem:[%s1 + $0x68] sm:$0xff]
        %v243 = vld [vmem:[%s1 + $0x70] sm:$0xff]
        %v244 = vld [vmem:[%s1 + $0x78] sm:$0xff]
        %v245 = vld [vmem:[%s1 + $0x80] sm:$0xff]
        %v246 = vld [vmem:[%s1 + $0x88] sm:$0xff]
        %v247 = vld [vmem:[%s1 + $0x90] sm:$0xff]
        %v248 = vld [vmem:[%s1 + $0x98] sm:$0xff]
        %v249 = vld [vmem:[%s1 + $0xa0] sm:$0xff]
        %v250 = vld [vmem:[%s1 + $0xa8] sm:$0xff]
        %v251 = vld [vmem:[%s1 + $0xb0] sm:$0xff]
        %v252 = vld [vmem:[%s1 + $0xb8] sm:$0xff]
        %v253 = vld [vmem:[%s1 + $0xc0] sm:$0xff]
        %v254 = vld [vmem:[%s1 + $0xc8] sm:$0xff]
        %v255 = vld [vmem:[%s1 + $0xd0] sm:$0xff]
        %v256 = vld [vmem:[%s1 + $0xd8] sm:$0xff]
        %v257 = vld [vmem:[%s1 + $0xe0] sm:$0xff]
        %v258 = vld [vmem:[%s1 + $0xe8] sm:$0xff]
        %v259 = vld [vmem:[%s1 + $0xf0] sm:$0xff]
        %v260 = vld [vmem:[%s1 + $0xf8] sm:$0xff]
        %v261 = vld [vmem:[%s1 + $0x100] sm:$0xff]
        %v262 = vld [vmem:[%s1 + $0x108] sm:$0xff]
        %v263 = vld [vmem:[%s1 + $0x110] sm:$0xff]
        %v264 = vld [vmem:[%s1 + $0x118] sm:$0xff]
        %v265 = vld [vmem:[%s1 + $0x120] sm:$0xff]
        %v266 = vld [vmem:[%s1 + $0x128] sm:$0xff]
        %v267 = vld [vmem:[%s1 + $0x130] sm:$0xff]
        %v268 = vld [vmem:[%s1 + $0x138] sm:$0xff]
        %v269 = vld [vmem:[%s1 + $0x140] sm:$0xff]
        %v270 = vld [vmem:[%s1 + $0x148] sm:$0xff]
        %v271 = vld [vmem:[%s1 + $0x150] sm:$0xff]
        %v272 = vld [vmem:[%s1 + $0x158] sm:$0xff]
        %v273 = vld [vmem:[%s1 + $0x160] sm:$0xff]
        %v274 = vld [vmem:[%s1 + $0x168] sm:$0xff]
        %v275 = vld [vmem:[%s1 + $0x170] sm:$0xff]
        %v276 = vld [vmem:[%s1 + $0x178] sm:$0xff]
        %v277 = vld [vmem:[%s226] sm:$0xff]
        %v278 = vld [vmem:[%s226 + $0x8] sm:$0xf]
        %v279 = vld [vmem:[%s226 + $0x2c] sm:$0xff]
        %v280 = vld [vmem:[%s226 + $0x34] sm:$0xf]
        %v285 = vunpack.c.l.b16 %v277
        %v286 = vunpack.c.h.b16 %v277
        %v287 = vunpack.c.l.b16 %v278
        %v288 = vunpack.c.l.b16 %v279
        %v289 = vunpack.c.h.b16 %v279
        %v290 = vunpack.c.l.b16 %v280
        %v291 = vpack.c.b16 %v288, %v285
        %v292 = vpack.c.b16 %v289, %v286
        %v293 = vpack.c.b16 %v290, %v287
        %v345 = vunpack.c.l.b16 %v229
        %v346 = vunpack.c.h.b16 %v229
        %v347 = vunpack.c.l.b16 %v230
        %v348 = vunpack.c.h.b16 %v230
        %v349 = vunpack.c.l.b16 %v231
        %v350 = vunpack.c.h.b16 %v231
        %v351 = vunpack.c.l.b16 %v232
        %v352 = vunpack.c.h.b16 %v232
        %v353 = vunpack.c.l.b16 %v233
        %v354 = vunpack.c.h.b16 %v233
        %v355 = vunpack.c.l.b16 %v234
        %v356 = vunpack.c.h.b16 %v234
        %v357 = vunpack.c.l.b16 %v235
        %v358 = vunpack.c.h.b16 %v235
        %v359 = vunpack.c.l.b16 %v236
        %v360 = vunpack.c.h.b16 %v236
        %v361 = vunpack.c.l.b16 %v237
        %v362 = vunpack.c.h.b16 %v237
        %v363 = vunpack.c.l.b16 %v238
        %v364 = vunpack.c.h.b16 %v238
        %v365 = vunpack.c.l.b16 %v239
        %v366 = vunpack.c.h.b16 %v239
        %v367 = vunpack.c.l.b16 %v240
        %v368 = vunpack.c.h.b16 %v240
        %v369 = vunpack.c.l.b16 %v241
        %v370 = vunpack.c.h.b16 %v241
        %v371 = vunpack.c.l.b16 %v242
        %v372 = vunpack.c.h.b16 %v242
        %v373 = vunpack.c.l.b16 %v243
        %v374 = vunpack.c.h.b16 %v243
        %v375 = vunpack.c.l.b16 %v244
        %v376 = vunpack.c.h.b16 %v244
        %v377 = vunpack.c.l.b16 %v245
        %v378 = vunpack.c.h.b16 %v245
        %v379 = vunpack.c.l.b16 %v246
        %v380 = vunpack.c.h.b16 %v246
        %v381 = vunpack.c.l.b16 %v247
        %v382 = vunpack.c.h.b16 %v247
        %v383 = vunpack.c.l.b16 %v248
        %v384 = vunpack.c.h.b16 %v248
        %v385 = vunpack.c.l.b16 %v249
        %v386 = vunpack.c.h.b16 %v249
        %v387 = vunpack.c.l.b16 %v250
        %v388 = vunpack.c.h.b16 %v250
        %v389 = vunpack.c.l.b16 %v251
        %v390 = vunpack.c.h.b16 %v251
        %v391 = vunpack.c.l.b16 %v252
        %v392 = vunpack.c.h.b16 %v252
        %v393 = vunpack.c.l.b16 %v253
        %v394 = vunpack.c.h.b16 %v253
        %v395 = vunpack.c.l.b16 %v254
        %v396 = vunpack.c.h.b16 %v254
        %v397 = vunpack.c.l.b16 %v255
        %v398 = vunpack.c.h.b16 %v255
        %v399 = vunpack.c.l.b16 %v256
        %v400 = vunpack.c.h.b16 %v256
        %v401 = vunpack.c.l.b16 %v257
        %v402 = vunpack.c.h.b16 %v257
        %v403 = vunpack.c.l.b16 %v258
        %v404 = vunpack.c.h.b16 %v258
        %v405 = vunpack.c.l.b16 %v259
        %v406 = vunpack.c.h.b16 %v259
        %v407 = vunpack.c.l.b16 %v260
        %v408 = vunpack.c.h.b16 %v260
        %v409 = vunpack.c.l.b16 %v261
        %v410 = vunpack.c.h.b16 %v261
        %v411 = vunpack.c.l.b16 %v262
        %v412 = vunpack.c.h.b16 %v262
        %v413 = vunpack.c.l.b16 %v263
        %v414 = vunpack.c.h.b16 %v263
        %v415 = vunpack.c.l.b16 %v264
        %v416 = vunpack.c.h.b16 %v264
        %v417 = vunpack.c.l.b16 %v265
        %v418 = vunpack.c.h.b16 %v265
        %v419 = vunpack.c.l.b16 %v266
        %v420 = vunpack.c.h.b16 %v266
        %v421 = vunpack.c.l.b16 %v267
        %v422 = vunpack.c.h.b16 %v267
        %v423 = vunpack.c.l.b16 %v268
        %v424 = vunpack.c.h.b16 %v268
        %v425 = vunpack.c.l.b16 %v269
        %v426 = vunpack.c.h.b16 %v269
        %v427 = vunpack.c.l.b16 %v270
        %v428 = vunpack.c.h.b16 %v270
        %v429 = vunpack.c.l.b16 %v271
        %v430 = vunpack.c.h.b16 %v271
        %v431 = vunpack.c.l.b16 %v272
        %v432 = vunpack.c.h.b16 %v272
        %v433 = vunpack.c.l.b16 %v273
        %v434 = vunpack.c.h.b16 %v273
        %v435 = vunpack.c.l.b16 %v274
        %v436 = vunpack.c.h.b16 %v274
        %v437 = vunpack.c.l.b16 %v275
        %v438 = vunpack.c.h.b16 %v275
        %v439 = vunpack.c.l.b16 %v276
        %v440 = vunpack.c.h.b16 %v276
        %v441 = vpack.c.b16 %v347, %v345
        %v442 = vpack.c.b16 %v348, %v346
        %v443 = vpack.c.b16 %v351, %v349
        %v444 = vpack.c.b16 %v352, %v350
        %v445 = vpack.c.b16 %v355, %v353
        %v446 = vpack.c.b16 %v356, %v354
        %v447 = vpack.c.b16 %v359, %v357
        %v448 = vpack.c.b16 %v360, %v358
        %v449 = vpack.c.b16 %v363, %v361
        %v450 = vpack.c.b16 %v364, %v362
        %v451 = vpack.c.b16 %v367, %v365
        %v452 = vpack.c.b16 %v368, %v366
        %v453 = vpack.c.b16 %v371, %v369
        %v454 = vpack.c.b16 %v372, %v370
        %v455 = vpack.c.b16 %v375, %v373
        %v456 = vpack.c.b16 %v376, %v374
        %v457 = vpack.c.b16 %v379, %v377
        %v458 = vpack.c.b16 %v380, %v378
        %v459 = vpack.c.b16 %v383, %v381
        %v460 = vpack.c.b16 %v384, %v382
        %v461 = vpack.c.b16 %v387, %v385
        %v462 = vpack.c.b16 %v388, %v386
        %v463 = vpack.c.b16 %v391, %v389
        %v464 = vpack.c.b16 %v392, %v390
        %v465 = vpack.c.b16 %v395, %v393
        %v466 = vpack.c.b16 %v396, %v394
        %v467 = vpack.c.b16 %v399, %v397
        %v468 = vpack.c.b16 %v400, %v398
        %v469 = vpack.c.b16 %v403, %v401
        %v470 = vpack.c.b16 %v404, %v402
        %v471 = vpack.c.b16 %v407, %v405
        %v472 = vpack.c.b16 %v408, %v406
        %v473 = vpack.c.b16 %v411, %v409
        %v474 = vpack.c.b16 %v412, %v410
        %v475 = vpack.c.b16 %v415, %v413
        %v476 = vpack.c.b16 %v416, %v414
        %v477 = vpack.c.b16 %v419, %v417
        %v478 = vpack.c.b16 %v420, %v418
        %v479 = vpack.c.b16 %v423, %v421
        %v480 = vpack.c.b16 %v424, %v422
        %v481 = vpack.c.b16 %v427, %v425
        %v482 = vpack.c.b16 %v428, %v426
        %v483 = vpack.c.b16 %v431, %v429
        %v484 = vpack.c.b16 %v432, %v430
        %v485 = vpack.c.b16 %v435, %v433
        %v486 = vpack.c.b16 %v436, %v434
        %v487 = vpack.c.b16 %v439, %v437
        %v488 = vpack.c.b16 %v440, %v438
        %537 = vmatpush.bf16.msra.mxu0 %v455
        %538 = vmatpush.bf16.msra.mxu0 %v453
        %539 = vmatpush.bf16.msra.mxu0 %v451
        %540 = vmatpush.bf16.msra.mxu0 %v449
        %541 = vmatpush.bf16.msra.mxu0 %v447
        %542 = vmatpush.bf16.msra.mxu0 %v445
        %543 = vmatpush.bf16.msra.mxu0 %v443
        %544 = vmatpush.bf16.msra.mxu0 %v441
        %545 = vmatmul.bf16.gmra.mxu0 %v291
        %v546 = vpop.f32.mrf.mxu0
        %v547 = vadd.f32 0.0, %v546
        %v548 = vpop.f32.mrf.mxu0
        %v549 = vadd.f32 0.0, %v548
        %550 = vdwg.mxu0
        %551 = vmatpush.bf16.msra.mxu0 %v471
        %552 = vmatpush.bf16.msra.mxu0 %v469
        %553 = vmatpush.bf16.msra.mxu0 %v467
        %554 = vmatpush.bf16.msra.mxu0 %v465
        %555 = vmatpush.bf16.msra.mxu0 %v463
        %556 = vmatpush.bf16.msra.mxu0 %v461
        %557 = vmatpush.bf16.msra.mxu0 %v459
        %558 = vmatpush.bf16.msra.mxu0 %v457
        %559 = vmatmul.bf16.gmra.mxu0 %v292
        %v560 = vpop.f32.mrf.mxu0
        %v561 = vadd.f32 %v547, %v560
        %v562 = vpop.f32.mrf.mxu0
        %v563 = vadd.f32 %v549, %v562
        %564 = vdwg.mxu0
        %565 = vmatpush.bf16.msra.mxu0 %v487
        %566 = vmatpush.bf16.msra.mxu0 %v485
        %567 = vmatpush.bf16.msra.mxu0 %v483
        %568 = vmatpush.bf16.msra.mxu0 %v481
        %569 = vmatpush.bf16.msra.mxu0 %v479
        %570 = vmatpush.bf16.msra.mxu0 %v477
        %571 = vmatpush.bf16.msra.mxu0 %v475
        %572 = vmatpush.bf16.msra.mxu0 %v473
        %573 = vmatmul.bf16.gmra.mxu0 %v293
        %v574 = vpop.f32.mrf.mxu0
        %v575 = vadd.f32 %v561, %v574
        %v576 = vpop.f32.mrf.mxu0
        %v577 = vadd.f32 %v563, %v576
        %578 = vdwg.mxu0
        %579 = vmatpush.bf16.msra.mxu0 %v456
        %580 = vmatpush.bf16.msra.mxu0 %v454
        %581 = vmatpush.bf16.msra.mxu0 %v452
        %582 = vmatpush.bf16.msra.mxu0 %v450
        %583 = vmatpush.bf16.msra.mxu0 %v448
        %584 = vmatpush.bf16.msra.mxu0 %v446
        %585 = vmatpush.bf16.msra.mxu0 %v444
        %586 = vmatpush.bf16.msra.mxu0 %v442
        %587 = vmatmul.bf16.gmra.mxu0 %v291
        %v588 = vpop.f32.mrf.mxu0
        %v589 = vadd.f32 0.0, %v588
        %v590 = vpop.f32.mrf.mxu0
        %v591 = vadd.f32 0.0, %v590
        %592 = vdwg.mxu0
        %593 = vmatpush.bf16.msra.mxu0 %v472
        %594 = vmatpush.bf16.msra.mxu0 %v470
        %595 = vmatpush.bf16.msra.mxu0 %v468
        %596 = vmatpush.bf16.msra.mxu0 %v466
        %597 = vmatpush.bf16.msra.mxu0 %v464
        %598 = vmatpush.bf16.msra.mxu0 %v462
        %599 = vmatpush.bf16.msra.mxu0 %v460
        %600 = vmatpush.bf16.msra.mxu0 %v458
        %601 = vmatmul.bf16.gmra.mxu0 %v292
        %v602 = vpop.f32.mrf.mxu0
        %v603 = vadd.f32 %v589, %v602
        %v604 = vpop.f32.mrf.mxu0
        %v605 = vadd.f32 %v591, %v604
        %606 = vdwg.mxu0
        %607 = vmatpush.bf16.msra.mxu0 %v488
        %608 = vmatpush.bf16.msra.mxu0 %v486
        %609 = vmatpush.bf16.msra.mxu0 %v484
        %610 = vmatpush.bf16.msra.mxu0 %v482
        %611 = vmatpush.bf16.msra.mxu0 %v480
        %612 = vmatpush.bf16.msra.mxu0 %v478
        %613 = vmatpush.bf16.msra.mxu0 %v476
        %614 = vmatpush.bf16.msra.mxu0 %v474
        %615 = vmatmul.bf16.gmra.mxu0 %v293
        %v616 = vpop.f32.mrf.mxu0
        %v617 = vadd.f32 %v603, %v616
        %v618 = vpop.f32.mrf.mxu0
        %v619 = vadd.f32 %v605, %v618
        %620 = vdwg.mxu0
        %v621 = vmax.f32 %v575, %v617
        %v622 = vmax.f32 %v577, %v619
        %s623 = scalar_lea.vmem %s226, 4
        %v624 = vld [vmem:[%s623] sm:$0xff]
        %v625 = vld [vmem:[%s623 + $0x8] sm:$0xf]
        %v626 = vld [vmem:[%s623 + $0x2c] sm:$0xff]
        %v627 = vld [vmem:[%s623 + $0x34] sm:$0xf]
        %v632 = vunpack.c.l.b16 %v624
        %v633 = vunpack.c.h.b16 %v624
        %v634 = vunpack.c.l.b16 %v625
        %v635 = vunpack.c.l.b16 %v626
        %v636 = vunpack.c.h.b16 %v626
        %v637 = vunpack.c.l.b16 %v627
        %v638 = vpack.c.b16 %v635, %v632
        %v639 = vpack.c.b16 %v636, %v633
        %v640 = vpack.c.b16 %v637, %v634
        %644 = vmatpush.bf16.msra.mxu0 %v455
        %645 = vmatpush.bf16.msra.mxu0 %v453
        %646 = vmatpush.bf16.msra.mxu0 %v451
        %647 = vmatpush.bf16.msra.mxu0 %v449
        %648 = vmatpush.bf16.msra.mxu0 %v447
        %649 = vmatpush.bf16.msra.mxu0 %v445
        %650 = vmatpush.bf16.msra.mxu0 %v443
        %651 = vmatpush.bf16.msra.mxu0 %v441
        %652 = vmatmul.bf16.gmra.mxu0 %v638
        %v653 = vpop.f32.mrf.mxu0
        %v654 = vadd.f32 0.0, %v653
        %v655 = vpop.f32.mrf.mxu0
        %v656 = vadd.f32 0.0, %v655
        %657 = vdwg.mxu0
        %658 = vmatpush.bf16.msra.mxu0 %v471
        %659 = vmatpush.bf16.msra.mxu0 %v469
        %660 = vmatpush.bf16.msra.mxu0 %v467
        %661 = vmatpush.bf16.msra.mxu0 %v465
        %662 = vmatpush.bf16.msra.mxu0 %v463
        %663 = vmatpush.bf16.msra.mxu0 %v461
        %664 = vmatpush.bf16.msra.mxu0 %v459
        %665 = vmatpush.bf16.msra.mxu0 %v457
        %666 = vmatmul.bf16.gmra.mxu0 %v639
        %v667 = vpop.f32.mrf.mxu0
        %v668 = vadd.f32 %v654, %v667
        %v669 = vpop.f32.mrf.mxu0
        %v670 = vadd.f32 %v656, %v669
        %671 = vdwg.mxu0
        %672 = vmatpush.bf16.msra.mxu0 %v487
        %673 = vmatpush.bf16.msra.mxu0 %v485
        %674 = vmatpush.bf16.msra.mxu0 %v483
        %675 = vmatpush.bf16.msra.mxu0 %v481
        %676 = vmatpush.bf16.msra.mxu0 %v479
        %677 = vmatpush.bf16.msra.mxu0 %v477
        %678 = vmatpush.bf16.msra.mxu0 %v475
        %679 = vmatpush.bf16.msra.mxu0 %v473
        %680 = vmatmul.bf16.gmra.mxu0 %v640
        %v681 = vpop.f32.mrf.mxu0
        %v682 = vadd.f32 %v668, %v681
        %v683 = vpop.f32.mrf.mxu0
        %v684 = vadd.f32 %v670, %v683
        %685 = vdwg.mxu0
        %686 = vmatpush.bf16.msra.mxu0 %v456
        %687 = vmatpush.bf16.msra.mxu0 %v454
        %688 = vmatpush.bf16.msra.mxu0 %v452
        %689 = vmatpush.bf16.msra.mxu0 %v450
        %690 = vmatpush.bf16.msra.mxu0 %v448
        %691 = vmatpush.bf16.msra.mxu0 %v446
        %692 = vmatpush.bf16.msra.mxu0 %v444
        %693 = vmatpush.bf16.msra.mxu0 %v442
        %694 = vmatmul.bf16.gmra.mxu0 %v638
        %v695 = vpop.f32.mrf.mxu0
        %v696 = vadd.f32 0.0, %v695
        %v697 = vpop.f32.mrf.mxu0
        %v698 = vadd.f32 0.0, %v697
        %699 = vdwg.mxu0
        %700 = vmatpush.bf16.msra.mxu0 %v472
        %701 = vmatpush.bf16.msra.mxu0 %v470
        %702 = vmatpush.bf16.msra.mxu0 %v468
        %703 = vmatpush.bf16.msra.mxu0 %v466
        %704 = vmatpush.bf16.msra.mxu0 %v464
        %705 = vmatpush.bf16.msra.mxu0 %v462
        %706 = vmatpush.bf16.msra.mxu0 %v460
        %707 = vmatpush.bf16.msra.mxu0 %v458
        %708 = vmatmul.bf16.gmra.mxu0 %v639
        %v709 = vpop.f32.mrf.mxu0
        %v710 = vadd.f32 %v696, %v709
        %v711 = vpop.f32.mrf.mxu0
        %v712 = vadd.f32 %v698, %v711
        %713 = vdwg.mxu0
        %714 = vmatpush.bf16.msra.mxu0 %v488
        %715 = vmatpush.bf16.msra.mxu0 %v486
        %716 = vmatpush.bf16.msra.mxu0 %v484
        %717 = vmatpush.bf16.msra.mxu0 %v482
        %718 = vmatpush.bf16.msra.mxu0 %v480
        %719 = vmatpush.bf16.msra.mxu0 %v478
        %720 = vmatpush.bf16.msra.mxu0 %v476
        %721 = vmatpush.bf16.msra.mxu0 %v474
        %722 = vmatmul.bf16.gmra.mxu0 %v640
        %v723 = vpop.f32.mrf.mxu0
        %v724 = vadd.f32 %v710, %v723
        %v725 = vpop.f32.mrf.mxu0
        %v726 = vadd.f32 %v712, %v725
        %727 = vdwg.mxu0
        %v728 = vmax.f32 %v682, %v724
        %v729 = vmax.f32 %v684, %v726
        %v730 = vmax.f32 %v621, %v728
        %v731 = vmax.f32 %v622, %v729
        %s732 = scalar_lea.vmem %s226, 8
        %v733 = vld [vmem:[%s732] sm:$0xff]
        %v734 = vld [vmem:[%s732 + $0x8] sm:$0xf]
        %v735 = vld [vmem:[%s732 + $0x2c] sm:$0xff]
        %v736 = vld [vmem:[%s732 + $0x34] sm:$0xf]
        %v741 = vunpack.c.l.b16 %v733
        %v742 = vunpack.c.h.b16 %v733
        %v743 = vunpack.c.l.b16 %v734
        %v744 = vunpack.c.l.b16 %v735
        %v745 = vunpack.c.h.b16 %v735
        %v746 = vunpack.c.l.b16 %v736
        %v747 = vpack.c.b16 %v744, %v741
        %v748 = vpack.c.b16 %v745, %v742
        %v749 = vpack.c.b16 %v746, %v743
        %753 = vmatpush.bf16.msra.mxu0 %v455
        %754 = vmatpush.bf16.msra.mxu0 %v453
        %755 = vmatpush.bf16.msra.mxu0 %v451
        %756 = vmatpush.bf16.msra.mxu0 %v449
        %757 = vmatpush.bf16.msra.mxu0 %v447
        %758 = vmatpush.bf16.msra.mxu0 %v445
        %759 = vmatpush.bf16.msra.mxu0 %v443
        %760 = vmatpush.bf16.msra.mxu0 %v441
        %761 = vmatmul.bf16.gmra.mxu0 %v747
        %v762 = vpop.f32.mrf.mxu0
        %v763 = vadd.f32 0.0, %v762
        %v764 = vpop.f32.mrf.mxu0
        %v765 = vadd.f32 0.0, %v764
        %766 = vdwg.mxu0
        %767 = vmatpush.bf16.msra.mxu0 %v471
        %768 = vmatpush.bf16.msra.mxu0 %v469
        %769 = vmatpush.bf16.msra.mxu0 %v467
        %770 = vmatpush.bf16.msra.mxu0 %v465
        %771 = vmatpush.bf16.msra.mxu0 %v463
        %772 = vmatpush.bf16.msra.mxu0 %v461
        %773 = vmatpush.bf16.msra.mxu0 %v459
        %774 = vmatpush.bf16.msra.mxu0 %v457
        %775 = vmatmul.bf16.gmra.mxu0 %v748
        %v776 = vpop.f32.mrf.mxu0
        %v777 = vadd.f32 %v763, %v776
        %v778 = vpop.f32.mrf.mxu0
        %v779 = vadd.f32 %v765, %v778
        %780 = vdwg.mxu0
        %781 = vmatpush.bf16.msra.mxu0 %v487
        %782 = vmatpush.bf16.msra.mxu0 %v485
        %783 = vmatpush.bf16.msra.mxu0 %v483
        %784 = vmatpush.bf16.msra.mxu0 %v481
        %785 = vmatpush.bf16.msra.mxu0 %v479
        %786 = vmatpush.bf16.msra.mxu0 %v477
        %787 = vmatpush.bf16.msra.mxu0 %v475
        %788 = vmatpush.bf16.msra.mxu0 %v473
        %789 = vmatmul.bf16.gmra.mxu0 %v749
        %v790 = vpop.f32.mrf.mxu0
        %v791 = vadd.f32 %v777, %v790
        %v792 = vpop.f32.mrf.mxu0
        %v793 = vadd.f32 %v779, %v792
        %794 = vdwg.mxu0
        %795 = vmatpush.bf16.msra.mxu0 %v456
        %796 = vmatpush.bf16.msra.mxu0 %v454
        %797 = vmatpush.bf16.msra.mxu0 %v452
        %798 = vmatpush.bf16.msra.mxu0 %v450
        %799 = vmatpush.bf16.msra.mxu0 %v448
        %800 = vmatpush.bf16.msra.mxu0 %v446
        %801 = vmatpush.bf16.msra.mxu0 %v444
        %802 = vmatpush.bf16.msra.mxu0 %v442
        %803 = vmatmul.bf16.gmra.mxu0 %v747
        %v804 = vpop.f32.mrf.mxu0
        %v805 = vadd.f32 0.0, %v804
        %v806 = vpop.f32.mrf.mxu0
        %v807 = vadd.f32 0.0, %v806
        %808 = vdwg.mxu0
        %809 = vmatpush.bf16.msra.mxu0 %v472
        %810 = vmatpush.bf16.msra.mxu0 %v470
        %811 = vmatpush.bf16.msra.mxu0 %v468
        %812 = vmatpush.bf16.msra.mxu0 %v466
        %813 = vmatpush.bf16.msra.mxu0 %v464
        %814 = vmatpush.bf16.msra.mxu0 %v462
        %815 = vmatpush.bf16.msra.mxu0 %v460
        %816 = vmatpush.bf16.msra.mxu0 %v458
        %817 = vmatmul.bf16.gmra.mxu0 %v748
        %v818 = vpop.f32.mrf.mxu0
        %v819 = vadd.f32 %v805, %v818
        %v820 = vpop.f32.mrf.mxu0
        %v821 = vadd.f32 %v807, %v820
        %822 = vdwg.mxu0
        %823 = vmatpush.bf16.msra.mxu0 %v488
        %824 = vmatpush.bf16.msra.mxu0 %v486
        %825 = vmatpush.bf16.msra.mxu0 %v484
        %826 = vmatpush.bf16.msra.mxu0 %v482
        %827 = vmatpush.bf16.msra.mxu0 %v480
        %828 = vmatpush.bf16.msra.mxu0 %v478
        %829 = vmatpush.bf16.msra.mxu0 %v476
        %830 = vmatpush.bf16.msra.mxu0 %v474
        %831 = vmatmul.bf16.gmra.mxu0 %v749
        %v832 = vpop.f32.mrf.mxu0
        %v833 = vadd.f32 %v819, %v832
        %v834 = vpop.f32.mrf.mxu0
        %v835 = vadd.f32 %v821, %v834
        %836 = vdwg.mxu0
        %v837 = vmax.f32 %v791, %v833
        %v838 = vmax.f32 %v793, %v835
        %v839 = vmax.f32 %v730, %v837
        %v840 = vmax.f32 %v731, %v838
        %s841 = scalar_lea.vmem %s226, 12
        %v842 = vld [vmem:[%s841] sm:$0xff]
        %v843 = vld [vmem:[%s841 + $0x8] sm:$0xf]
        %v844 = vld [vmem:[%s841 + $0x2c] sm:$0xff]
        %v845 = vld [vmem:[%s841 + $0x34] sm:$0xf]
        %v850 = vunpack.c.l.b16 %v842
        %v851 = vunpack.c.h.b16 %v842
        %v852 = vunpack.c.l.b16 %v843
        %v853 = vunpack.c.l.b16 %v844
        %v854 = vunpack.c.h.b16 %v844
        %v855 = vunpack.c.l.b16 %v845
        %v856 = vpack.c.b16 %v853, %v850
        %v857 = vpack.c.b16 %v854, %v851
        %v858 = vpack.c.b16 %v855, %v852
        %862 = vmatpush.bf16.msra.mxu0 %v455
        %863 = vmatpush.bf16.msra.mxu0 %v453
        %864 = vmatpush.bf16.msra.mxu0 %v451
        %865 = vmatpush.bf16.msra.mxu0 %v449
        %866 = vmatpush.bf16.msra.mxu0 %v447
        %867 = vmatpush.bf16.msra.mxu0 %v445
        %868 = vmatpush.bf16.msra.mxu0 %v443
        %869 = vmatpush.bf16.msra.mxu0 %v441
        %870 = vmatmul.bf16.gmra.mxu0 %v856
        %v871 = vpop.f32.mrf.mxu0
        %v872 = vadd.f32 0.0, %v871
        %v873 = vpop.f32.mrf.mxu0
        %v874 = vadd.f32 0.0, %v873
        %875 = vdwg.mxu0
        %876 = vmatpush.bf16.msra.mxu0 %v471
        %877 = vmatpush.bf16.msra.mxu0 %v469
        %878 = vmatpush.bf16.msra.mxu0 %v467
        %879 = vmatpush.bf16.msra.mxu0 %v465
        %880 = vmatpush.bf16.msra.mxu0 %v463
        %881 = vmatpush.bf16.msra.mxu0 %v461
        %882 = vmatpush.bf16.msra.mxu0 %v459
        %883 = vmatpush.bf16.msra.mxu0 %v457
        %884 = vmatmul.bf16.gmra.mxu0 %v857
        %v885 = vpop.f32.mrf.mxu0
        %v886 = vadd.f32 %v872, %v885
        %v887 = vpop.f32.mrf.mxu0
        %v888 = vadd.f32 %v874, %v887
        %889 = vdwg.mxu0
        %890 = vmatpush.bf16.msra.mxu0 %v487
        %891 = vmatpush.bf16.msra.mxu0 %v485
        %892 = vmatpush.bf16.msra.mxu0 %v483
        %893 = vmatpush.bf16.msra.mxu0 %v481
        %894 = vmatpush.bf16.msra.mxu0 %v479
        %895 = vmatpush.bf16.msra.mxu0 %v477
        %896 = vmatpush.bf16.msra.mxu0 %v475
        %897 = vmatpush.bf16.msra.mxu0 %v473
        %898 = vmatmul.bf16.gmra.mxu0 %v858
        %v899 = vpop.f32.mrf.mxu0
        %v900 = vadd.f32 %v886, %v899
        %v901 = vpop.f32.mrf.mxu0
        %v902 = vadd.f32 %v888, %v901
        %903 = vdwg.mxu0
        %904 = vmatpush.bf16.msra.mxu0 %v456
        %905 = vmatpush.bf16.msra.mxu0 %v454
        %906 = vmatpush.bf16.msra.mxu0 %v452
        %907 = vmatpush.bf16.msra.mxu0 %v450
        %908 = vmatpush.bf16.msra.mxu0 %v448
        %909 = vmatpush.bf16.msra.mxu0 %v446
        %910 = vmatpush.bf16.msra.mxu0 %v444
        %911 = vmatpush.bf16.msra.mxu0 %v442
        %912 = vmatmul.bf16.gmra.mxu0 %v856
        %v913 = vpop.f32.mrf.mxu0
        %v914 = vadd.f32 0.0, %v913
        %v915 = vpop.f32.mrf.mxu0
        %v916 = vadd.f32 0.0, %v915
        %917 = vdwg.mxu0
        %918 = vmatpush.bf16.msra.mxu0 %v472
        %919 = vmatpush.bf16.msra.mxu0 %v470
        %920 = vmatpush.bf16.msra.mxu0 %v468
        %921 = vmatpush.bf16.msra.mxu0 %v466
        %922 = vmatpush.bf16.msra.mxu0 %v464
        %923 = vmatpush.bf16.msra.mxu0 %v462
        %924 = vmatpush.bf16.msra.mxu0 %v460
        %925 = vmatpush.bf16.msra.mxu0 %v458
        %926 = vmatmul.bf16.gmra.mxu0 %v857
        %v927 = vpop.f32.mrf.mxu0
        %v928 = vadd.f32 %v914, %v927
        %v929 = vpop.f32.mrf.mxu0
        %v930 = vadd.f32 %v916, %v929
        %931 = vdwg.mxu0
        %932 = vmatpush.bf16.msra.mxu0 %v488
        %933 = vmatpush.bf16.msra.mxu0 %v486
        %934 = vmatpush.bf16.msra.mxu0 %v484
        %935 = vmatpush.bf16.msra.mxu0 %v482
        %936 = vmatpush.bf16.msra.mxu0 %v480
        %937 = vmatpush.bf16.msra.mxu0 %v478
        %938 = vmatpush.bf16.msra.mxu0 %v476
        %939 = vmatpush.bf16.msra.mxu0 %v474
        %940 = vmatmul.bf16.gmra.mxu0 %v858
        %v941 = vpop.f32.mrf.mxu0
        %v942 = vadd.f32 %v928, %v941
        %v943 = vpop.f32.mrf.mxu0
        %v944 = vadd.f32 %v930, %v943
        %945 = vdwg.mxu0
        %v946 = vmax.f32 %v900, %v942
        %v947 = vmax.f32 %v902, %v944
        %v948 = vmax.f32 %v839, %v946
        %v949 = vmax.f32 %v840, %v947
        %s950 = scalar_lea.vmem %s226, 16
        %v951 = vld [vmem:[%s950] sm:$0xff]
        %v952 = vld [vmem:[%s950 + $0x8] sm:$0xf]
        %v953 = vld [vmem:[%s950 + $0x2c] sm:$0xff]
        %v954 = vld [vmem:[%s950 + $0x34] sm:$0xf]
        %v959 = vunpack.c.l.b16 %v951
        %v960 = vunpack.c.h.b16 %v951
        %v961 = vunpack.c.l.b16 %v952
        %v962 = vunpack.c.l.b16 %v953
        %v963 = vunpack.c.h.b16 %v953
        %v964 = vunpack.c.l.b16 %v954
        %v965 = vpack.c.b16 %v962, %v959
        %v966 = vpack.c.b16 %v963, %v960
        %v967 = vpack.c.b16 %v964, %v961
        %971 = vmatpush.bf16.msra.mxu0 %v455
        %972 = vmatpush.bf16.msra.mxu0 %v453
        %973 = vmatpush.bf16.msra.mxu0 %v451
        %974 = vmatpush.bf16.msra.mxu0 %v449
        %975 = vmatpush.bf16.msra.mxu0 %v447
        %976 = vmatpush.bf16.msra.mxu0 %v445
        %977 = vmatpush.bf16.msra.mxu0 %v443
        %978 = vmatpush.bf16.msra.mxu0 %v441
        %979 = vmatmul.bf16.gmra.mxu0 %v965
        %v980 = vpop.f32.mrf.mxu0
        %v981 = vadd.f32 0.0, %v980
        %v982 = vpop.f32.mrf.mxu0
        %v983 = vadd.f32 0.0, %v982
        %984 = vdwg.mxu0
        %985 = vmatpush.bf16.msra.mxu0 %v471
        %986 = vmatpush.bf16.msra.mxu0 %v469
        %987 = vmatpush.bf16.msra.mxu0 %v467
        %988 = vmatpush.bf16.msra.mxu0 %v465
        %989 = vmatpush.bf16.msra.mxu0 %v463
        %990 = vmatpush.bf16.msra.mxu0 %v461
        %991 = vmatpush.bf16.msra.mxu0 %v459
        %992 = vmatpush.bf16.msra.mxu0 %v457
        %993 = vmatmul.bf16.gmra.mxu0 %v966
        %v994 = vpop.f32.mrf.mxu0
        %v995 = vadd.f32 %v981, %v994
        %v996 = vpop.f32.mrf.mxu0
        %v997 = vadd.f32 %v983, %v996
        %998 = vdwg.mxu0
        %999 = vmatpush.bf16.msra.mxu0 %v487
        %1000 = vmatpush.bf16.msra.mxu0 %v485
        %1001 = vmatpush.bf16.msra.mxu0 %v483
        %1002 = vmatpush.bf16.msra.mxu0 %v481
        %1003 = vmatpush.bf16.msra.mxu0 %v479
        %1004 = vmatpush.bf16.msra.mxu0 %v477
        %1005 = vmatpush.bf16.msra.mxu0 %v475
        %1006 = vmatpush.bf16.msra.mxu0 %v473
        %1007 = vmatmul.bf16.gmra.mxu0 %v967
        %v1008 = vpop.f32.mrf.mxu0
        %v1009 = vadd.f32 %v995, %v1008
        %v1010 = vpop.f32.mrf.mxu0
        %v1011 = vadd.f32 %v997, %v1010
        %1012 = vdwg.mxu0
        %1013 = vmatpush.bf16.msra.mxu0 %v456
        %1014 = vmatpush.bf16.msra.mxu0 %v454
        %1015 = vmatpush.bf16.msra.mxu0 %v452
        %1016 = vmatpush.bf16.msra.mxu0 %v450
        %1017 = vmatpush.bf16.msra.mxu0 %v448
        %1018 = vmatpush.bf16.msra.mxu0 %v446
        %1019 = vmatpush.bf16.msra.mxu0 %v444
        %1020 = vmatpush.bf16.msra.mxu0 %v442
        %1021 = vmatmul.bf16.gmra.mxu0 %v965
        %v1022 = vpop.f32.mrf.mxu0
        %v1023 = vadd.f32 0.0, %v1022
        %v1024 = vpop.f32.mrf.mxu0
        %v1025 = vadd.f32 0.0, %v1024
        %1026 = vdwg.mxu0
        %1027 = vmatpush.bf16.msra.mxu0 %v472
        %1028 = vmatpush.bf16.msra.mxu0 %v470
        %1029 = vmatpush.bf16.msra.mxu0 %v468
        %1030 = vmatpush.bf16.msra.mxu0 %v466
        %1031 = vmatpush.bf16.msra.mxu0 %v464
        %1032 = vmatpush.bf16.msra.mxu0 %v462
        %1033 = vmatpush.bf16.msra.mxu0 %v460
        %1034 = vmatpush.bf16.msra.mxu0 %v458
        %1035 = vmatmul.bf16.gmra.mxu0 %v966
        %v1036 = vpop.f32.mrf.mxu0
        %v1037 = vadd.f32 %v1023, %v1036
        %v1038 = vpop.f32.mrf.mxu0
        %v1039 = vadd.f32 %v1025, %v1038
        %1040 = vdwg.mxu0
        %1041 = vmatpush.bf16.msra.mxu0 %v488
        %1042 = vmatpush.bf16.msra.mxu0 %v486
        %1043 = vmatpush.bf16.msra.mxu0 %v484
        %1044 = vmatpush.bf16.msra.mxu0 %v482
        %1045 = vmatpush.bf16.msra.mxu0 %v480
        %1046 = vmatpush.bf16.msra.mxu0 %v478
        %1047 = vmatpush.bf16.msra.mxu0 %v476
        %1048 = vmatpush.bf16.msra.mxu0 %v474
        %1049 = vmatmul.bf16.gmra.mxu0 %v967
        %v1050 = vpop.f32.mrf.mxu0
        %v1051 = vadd.f32 %v1037, %v1050
        %v1052 = vpop.f32.mrf.mxu0
        %v1053 = vadd.f32 %v1039, %v1052
        %1054 = vdwg.mxu0
        %v1055 = vmax.f32 %v1009, %v1051
        %v1056 = vmax.f32 %v1011, %v1053
        %v1057 = vmax.f32 %v948, %v1055
        %v1058 = vmax.f32 %v949, %v1056
        %s1059 = scalar_lea.vmem %s226, 20
        %v1060 = vld [vmem:[%s1059] sm:$0xff]
        %v1061 = vld [vmem:[%s1059 + $0x8] sm:$0xf]
        %v1062 = vld [vmem:[%s1059 + $0x2c] sm:$0xff]
        %v1063 = vld [vmem:[%s1059 + $0x34] sm:$0xf]
        %v1068 = vunpack.c.l.b16 %v1060
        %v1069 = vunpack.c.h.b16 %v1060
        %v1070 = vunpack.c.l.b16 %v1061
        %v1071 = vunpack.c.l.b16 %v1062
        %v1072 = vunpack.c.h.b16 %v1062
        %v1073 = vunpack.c.l.b16 %v1063
        %v1074 = vpack.c.b16 %v1071, %v1068
        %v1075 = vpack.c.b16 %v1072, %v1069
        %v1076 = vpack.c.b16 %v1073, %v1070
        %1080 = vmatpush.bf16.msra.mxu0 %v455
        %1081 = vmatpush.bf16.msra.mxu0 %v453
        %1082 = vmatpush.bf16.msra.mxu0 %v451
        %1083 = vmatpush.bf16.msra.mxu0 %v449
        %1084 = vmatpush.bf16.msra.mxu0 %v447
        %1085 = vmatpush.bf16.msra.mxu0 %v445
        %1086 = vmatpush.bf16.msra.mxu0 %v443
        %1087 = vmatpush.bf16.msra.mxu0 %v441
        %1088 = vmatmul.bf16.gmra.mxu0 %v1074
        %v1089 = vpop.f32.mrf.mxu0
        %v1090 = vadd.f32 0.0, %v1089
        %v1091 = vpop.f32.mrf.mxu0
        %v1092 = vadd.f32 0.0, %v1091
        %1093 = vdwg.mxu0
        %1094 = vmatpush.bf16.msra.mxu0 %v471
        %1095 = vmatpush.bf16.msra.mxu0 %v469
        %1096 = vmatpush.bf16.msra.mxu0 %v467
        %1097 = vmatpush.bf16.msra.mxu0 %v465
        %1098 = vmatpush.bf16.msra.mxu0 %v463
        %1099 = vmatpush.bf16.msra.mxu0 %v461
        %1100 = vmatpush.bf16.msra.mxu0 %v459
        %1101 = vmatpush.bf16.msra.mxu0 %v457
        %1102 = vmatmul.bf16.gmra.mxu0 %v1075
        %v1103 = vpop.f32.mrf.mxu0
        %v1104 = vadd.f32 %v1090, %v1103
        %v1105 = vpop.f32.mrf.mxu0
        %v1106 = vadd.f32 %v1092, %v1105
        %1107 = vdwg.mxu0
        %1108 = vmatpush.bf16.msra.mxu0 %v487
        %1109 = vmatpush.bf16.msra.mxu0 %v485
        %1110 = vmatpush.bf16.msra.mxu0 %v483
        %1111 = vmatpush.bf16.msra.mxu0 %v481
        %1112 = vmatpush.bf16.msra.mxu0 %v479
        %1113 = vmatpush.bf16.msra.mxu0 %v477
        %1114 = vmatpush.bf16.msra.mxu0 %v475
        %1115 = vmatpush.bf16.msra.mxu0 %v473
        %1116 = vmatmul.bf16.gmra.mxu0 %v1076
        %v1117 = vpop.f32.mrf.mxu0
        %v1118 = vadd.f32 %v1104, %v1117
        %v1119 = vpop.f32.mrf.mxu0
        %v1120 = vadd.f32 %v1106, %v1119
        %1121 = vdwg.mxu0
        %1122 = vmatpush.bf16.msra.mxu0 %v456
        %1123 = vmatpush.bf16.msra.mxu0 %v454
        %1124 = vmatpush.bf16.msra.mxu0 %v452
        %1125 = vmatpush.bf16.msra.mxu0 %v450
        %1126 = vmatpush.bf16.msra.mxu0 %v448
        %1127 = vmatpush.bf16.msra.mxu0 %v446
        %1128 = vmatpush.bf16.msra.mxu0 %v444
        %1129 = vmatpush.bf16.msra.mxu0 %v442
        %1130 = vmatmul.bf16.gmra.mxu0 %v1074
        %v1131 = vpop.f32.mrf.mxu0
        %v1132 = vadd.f32 0.0, %v1131
        %v1133 = vpop.f32.mrf.mxu0
        %v1134 = vadd.f32 0.0, %v1133
        %1135 = vdwg.mxu0
        %1136 = vmatpush.bf16.msra.mxu0 %v472
        %1137 = vmatpush.bf16.msra.mxu0 %v470
        %1138 = vmatpush.bf16.msra.mxu0 %v468
        %1139 = vmatpush.bf16.msra.mxu0 %v466
        %1140 = vmatpush.bf16.msra.mxu0 %v464
        %1141 = vmatpush.bf16.msra.mxu0 %v462
        %1142 = vmatpush.bf16.msra.mxu0 %v460
        %1143 = vmatpush.bf16.msra.mxu0 %v458
        %1144 = vmatmul.bf16.gmra.mxu0 %v1075
        %v1145 = vpop.f32.mrf.mxu0
        %v1146 = vadd.f32 %v1132, %v1145
        %v1147 = vpop.f32.mrf.mxu0
        %v1148 = vadd.f32 %v1134, %v1147
        %1149 = vdwg.mxu0
        %1150 = vmatpush.bf16.msra.mxu0 %v488
        %1151 = vmatpush.bf16.msra.mxu0 %v486
        %1152 = vmatpush.bf16.msra.mxu0 %v484
        %1153 = vmatpush.bf16.msra.mxu0 %v482
        %1154 = vmatpush.bf16.msra.mxu0 %v480
        %1155 = vmatpush.bf16.msra.mxu0 %v478
        %1156 = vmatpush.bf16.msra.mxu0 %v476
        %1157 = vmatpush.bf16.msra.mxu0 %v474
        %1158 = vmatmul.bf16.gmra.mxu0 %v1076
        %v1159 = vpop.f32.mrf.mxu0
        %v1160 = vadd.f32 %v1146, %v1159
        %v1161 = vpop.f32.mrf.mxu0
        %v1162 = vadd.f32 %v1148, %v1161
        %1163 = vdwg.mxu0
        %v1164 = vmax.f32 %v1118, %v1160
        %v1165 = vmax.f32 %v1120, %v1162
        %v1166 = vmax.f32 %v1057, %v1164
        %v1167 = vmax.f32 %v1058, %v1165
        %s1168 = scalar_lea.vmem %s226, 24
        %v1169 = vld [vmem:[%s1168] sm:$0xff]
        %v1170 = vld [vmem:[%s1168 + $0x8] sm:$0xf]
        %v1171 = vld [vmem:[%s1168 + $0x2c] sm:$0xff]
        %v1172 = vld [vmem:[%s1168 + $0x34] sm:$0xf]
        %v1177 = vunpack.c.l.b16 %v1169
        %v1178 = vunpack.c.h.b16 %v1169
        %v1179 = vunpack.c.l.b16 %v1170
        %v1180 = vunpack.c.l.b16 %v1171
        %v1181 = vunpack.c.h.b16 %v1171
        %v1182 = vunpack.c.l.b16 %v1172
        %v1183 = vpack.c.b16 %v1180, %v1177
        %v1184 = vpack.c.b16 %v1181, %v1178
        %v1185 = vpack.c.b16 %v1182, %v1179
        %1189 = vmatpush.bf16.msra.mxu0 %v455
        %1190 = vmatpush.bf16.msra.mxu0 %v453
        %1191 = vmatpush.bf16.msra.mxu0 %v451
        %1192 = vmatpush.bf16.msra.mxu0 %v449
        %1193 = vmatpush.bf16.msra.mxu0 %v447
        %1194 = vmatpush.bf16.msra.mxu0 %v445
        %1195 = vmatpush.bf16.msra.mxu0 %v443
        %1196 = vmatpush.bf16.msra.mxu0 %v441
        %1197 = vmatmul.bf16.gmra.mxu0 %v1183
        %v1198 = vpop.f32.mrf.mxu0
        %v1199 = vadd.f32 0.0, %v1198
        %v1200 = vpop.f32.mrf.mxu0
        %v1201 = vadd.f32 0.0, %v1200
        %1202 = vdwg.mxu0
        %1203 = vmatpush.bf16.msra.mxu0 %v471
        %1204 = vmatpush.bf16.msra.mxu0 %v469
        %1205 = vmatpush.bf16.msra.mxu0 %v467
        %1206 = vmatpush.bf16.msra.mxu0 %v465
        %1207 = vmatpush.bf16.msra.mxu0 %v463
        %1208 = vmatpush.bf16.msra.mxu0 %v461
        %1209 = vmatpush.bf16.msra.mxu0 %v459
        %1210 = vmatpush.bf16.msra.mxu0 %v457
        %1211 = vmatmul.bf16.gmra.mxu0 %v1184
        %v1212 = vpop.f32.mrf.mxu0
        %v1213 = vadd.f32 %v1199, %v1212
        %v1214 = vpop.f32.mrf.mxu0
        %v1215 = vadd.f32 %v1201, %v1214
        %1216 = vdwg.mxu0
        %1217 = vmatpush.bf16.msra.mxu0 %v487
        %1218 = vmatpush.bf16.msra.mxu0 %v485
        %1219 = vmatpush.bf16.msra.mxu0 %v483
        %1220 = vmatpush.bf16.msra.mxu0 %v481
        %1221 = vmatpush.bf16.msra.mxu0 %v479
        %1222 = vmatpush.bf16.msra.mxu0 %v477
        %1223 = vmatpush.bf16.msra.mxu0 %v475
        %1224 = vmatpush.bf16.msra.mxu0 %v473
        %1225 = vmatmul.bf16.gmra.mxu0 %v1185
        %v1226 = vpop.f32.mrf.mxu0
        %v1227 = vadd.f32 %v1213, %v1226
        %v1228 = vpop.f32.mrf.mxu0
        %v1229 = vadd.f32 %v1215, %v1228
        %1230 = vdwg.mxu0
        %1231 = vmatpush.bf16.msra.mxu0 %v456
        %1232 = vmatpush.bf16.msra.mxu0 %v454
        %1233 = vmatpush.bf16.msra.mxu0 %v452
        %1234 = vmatpush.bf16.msra.mxu0 %v450
        %1235 = vmatpush.bf16.msra.mxu0 %v448
        %1236 = vmatpush.bf16.msra.mxu0 %v446
        %1237 = vmatpush.bf16.msra.mxu0 %v444
        %1238 = vmatpush.bf16.msra.mxu0 %v442
        %1239 = vmatmul.bf16.gmra.mxu0 %v1183
        %v1240 = vpop.f32.mrf.mxu0
        %v1241 = vadd.f32 0.0, %v1240
        %v1242 = vpop.f32.mrf.mxu0
        %v1243 = vadd.f32 0.0, %v1242
        %1244 = vdwg.mxu0
        %1245 = vmatpush.bf16.msra.mxu0 %v472
        %1246 = vmatpush.bf16.msra.mxu0 %v470
        %1247 = vmatpush.bf16.msra.mxu0 %v468
        %1248 = vmatpush.bf16.msra.mxu0 %v466
        %1249 = vmatpush.bf16.msra.mxu0 %v464
        %1250 = vmatpush.bf16.msra.mxu0 %v462
        %1251 = vmatpush.bf16.msra.mxu0 %v460
        %1252 = vmatpush.bf16.msra.mxu0 %v458
        %1253 = vmatmul.bf16.gmra.mxu0 %v1184
        %v1254 = vpop.f32.mrf.mxu0
        %v1255 = vadd.f32 %v1241, %v1254
        %v1256 = vpop.f32.mrf.mxu0
        %v1257 = vadd.f32 %v1243, %v1256
        %1258 = vdwg.mxu0
        %1259 = vmatpush.bf16.msra.mxu0 %v488
        %1260 = vmatpush.bf16.msra.mxu0 %v486
        %1261 = vmatpush.bf16.msra.mxu0 %v484
        %1262 = vmatpush.bf16.msra.mxu0 %v482
        %1263 = vmatpush.bf16.msra.mxu0 %v480
        %1264 = vmatpush.bf16.msra.mxu0 %v478
        %1265 = vmatpush.bf16.msra.mxu0 %v476
        %1266 = vmatpush.bf16.msra.mxu0 %v474
        %1267 = vmatmul.bf16.gmra.mxu0 %v1185
        %v1268 = vpop.f32.mrf.mxu0
        %v1269 = vadd.f32 %v1255, %v1268
        %v1270 = vpop.f32.mrf.mxu0
        %v1271 = vadd.f32 %v1257, %v1270
        %1272 = vdwg.mxu0
        %v1273 = vmax.f32 %v1227, %v1269
        %v1274 = vmax.f32 %v1229, %v1271
        %v1275 = vmax.f32 %v1166, %v1273
        %v1276 = vmax.f32 %v1167, %v1274
        %s1277 = scalar_lea.vmem %s226, 28
        %v1278 = vld [vmem:[%s1277] sm:$0xff]
        %v1279 = vld [vmem:[%s1277 + $0x8] sm:$0xf]
        %v1280 = vld [vmem:[%s1277 + $0x2c] sm:$0xff]
        %v1281 = vld [vmem:[%s1277 + $0x34] sm:$0xf]
        %v1286 = vunpack.c.l.b16 %v1278
        %v1287 = vunpack.c.h.b16 %v1278
        %v1288 = vunpack.c.l.b16 %v1279
        %v1289 = vunpack.c.l.b16 %v1280
        %v1290 = vunpack.c.h.b16 %v1280
        %v1291 = vunpack.c.l.b16 %v1281
        %v1292 = vpack.c.b16 %v1289, %v1286
        %v1293 = vpack.c.b16 %v1290, %v1287
        %v1294 = vpack.c.b16 %v1291, %v1288
        %1298 = vmatpush.bf16.msra.mxu0 %v455
        %1299 = vmatpush.bf16.msra.mxu0 %v453
        %1300 = vmatpush.bf16.msra.mxu0 %v451
        %1301 = vmatpush.bf16.msra.mxu0 %v449
        %1302 = vmatpush.bf16.msra.mxu0 %v447
        %1303 = vmatpush.bf16.msra.mxu0 %v445
        %1304 = vmatpush.bf16.msra.mxu0 %v443
        %1305 = vmatpush.bf16.msra.mxu0 %v441
        %1306 = vmatmul.bf16.gmra.mxu0 %v1292
        %v1307 = vpop.f32.mrf.mxu0
        %v1308 = vadd.f32 0.0, %v1307
        %v1309 = vpop.f32.mrf.mxu0
        %v1310 = vadd.f32 0.0, %v1309
        %1311 = vdwg.mxu0
        %1312 = vmatpush.bf16.msra.mxu0 %v471
        %1313 = vmatpush.bf16.msra.mxu0 %v469
        %1314 = vmatpush.bf16.msra.mxu0 %v467
        %1315 = vmatpush.bf16.msra.mxu0 %v465
        %1316 = vmatpush.bf16.msra.mxu0 %v463
        %1317 = vmatpush.bf16.msra.mxu0 %v461
        %1318 = vmatpush.bf16.msra.mxu0 %v459
        %1319 = vmatpush.bf16.msra.mxu0 %v457
        %1320 = vmatmul.bf16.gmra.mxu0 %v1293
        %v1321 = vpop.f32.mrf.mxu0
        %v1322 = vadd.f32 %v1308, %v1321
        %v1323 = vpop.f32.mrf.mxu0
        %v1324 = vadd.f32 %v1310, %v1323
        %1325 = vdwg.mxu0
        %1326 = vmatpush.bf16.msra.mxu0 %v487
        %1327 = vmatpush.bf16.msra.mxu0 %v485
        %1328 = vmatpush.bf16.msra.mxu0 %v483
        %1329 = vmatpush.bf16.msra.mxu0 %v481
        %1330 = vmatpush.bf16.msra.mxu0 %v479
        %1331 = vmatpush.bf16.msra.mxu0 %v477
        %1332 = vmatpush.bf16.msra.mxu0 %v475
        %1333 = vmatpush.bf16.msra.mxu0 %v473
        %1334 = vmatmul.bf16.gmra.mxu0 %v1294
        %v1335 = vpop.f32.mrf.mxu0
        %v1336 = vadd.f32 %v1322, %v1335
        %v1337 = vpop.f32.mrf.mxu0
        %v1338 = vadd.f32 %v1324, %v1337
        %1339 = vdwg.mxu0
        %1340 = vmatpush.bf16.msra.mxu0 %v456
        %1341 = vmatpush.bf16.msra.mxu0 %v454
        %1342 = vmatpush.bf16.msra.mxu0 %v452
        %1343 = vmatpush.bf16.msra.mxu0 %v450
        %1344 = vmatpush.bf16.msra.mxu0 %v448
        %1345 = vmatpush.bf16.msra.mxu0 %v446
        %1346 = vmatpush.bf16.msra.mxu0 %v444
        %1347 = vmatpush.bf16.msra.mxu0 %v442
        %1348 = vmatmul.bf16.gmra.mxu0 %v1292
        %v1349 = vpop.f32.mrf.mxu0
        %v1350 = vadd.f32 0.0, %v1349
        %v1351 = vpop.f32.mrf.mxu0
        %v1352 = vadd.f32 0.0, %v1351
        %1353 = vdwg.mxu0
        %1354 = vmatpush.bf16.msra.mxu0 %v472
        %1355 = vmatpush.bf16.msra.mxu0 %v470
        %1356 = vmatpush.bf16.msra.mxu0 %v468
        %1357 = vmatpush.bf16.msra.mxu0 %v466
        %1358 = vmatpush.bf16.msra.mxu0 %v464
        %1359 = vmatpush.bf16.msra.mxu0 %v462
        %1360 = vmatpush.bf16.msra.mxu0 %v460
        %1361 = vmatpush.bf16.msra.mxu0 %v458
        %1362 = vmatmul.bf16.gmra.mxu0 %v1293
        %v1363 = vpop.f32.mrf.mxu0
        %v1364 = vadd.f32 %v1350, %v1363
        %v1365 = vpop.f32.mrf.mxu0
        %v1366 = vadd.f32 %v1352, %v1365
        %1367 = vdwg.mxu0
        %1368 = vmatpush.bf16.msra.mxu0 %v488
        %1369 = vmatpush.bf16.msra.mxu0 %v486
        %1370 = vmatpush.bf16.msra.mxu0 %v484
        %1371 = vmatpush.bf16.msra.mxu0 %v482
        %1372 = vmatpush.bf16.msra.mxu0 %v480
        %1373 = vmatpush.bf16.msra.mxu0 %v478
        %1374 = vmatpush.bf16.msra.mxu0 %v476
        %1375 = vmatpush.bf16.msra.mxu0 %v474
        %1376 = vmatmul.bf16.gmra.mxu0 %v1294
        %v1377 = vpop.f32.mrf.mxu0
        %v1378 = vadd.f32 %v1364, %v1377
        %v1379 = vpop.f32.mrf.mxu0
        %v1380 = vadd.f32 %v1366, %v1379
        %1381 = vdwg.mxu0
        %v1382 = vmax.f32 %v1336, %v1378
        %v1383 = vmax.f32 %v1338, %v1380
        %v1384 = vmax.f32 %v1275, %v1382
        %v1385 = vmax.f32 %v1276, %v1383
        %v1386 = vld [vmem:[%s226 + $0x20] sm:$0xff]
        %v1387 = vld [vmem:[%s226 + $0x28] sm:$0xf]
        %v1388 = vld [vmem:[%s226 + $0x4c] sm:$0xff]
        %v1389 = vld [vmem:[%s226 + $0x54] sm:$0xf]
        %v1394 = vunpack.c.l.b16 %v1386
        %v1395 = vunpack.c.h.b16 %v1386
        %v1396 = vunpack.c.l.b16 %v1387
        %v1397 = vunpack.c.l.b16 %v1388
        %v1398 = vunpack.c.h.b16 %v1388
        %v1399 = vunpack.c.l.b16 %v1389
        %v1400 = vpack.c.b16 %v1397, %v1394
        %v1401 = vpack.c.b16 %v1398, %v1395
        %v1402 = vpack.c.b16 %v1399, %v1396
        %1406 = vmatpush.bf16.msra.mxu0 %v455
        %1407 = vmatpush.bf16.msra.mxu0 %v453
        %1408 = vmatpush.bf16.msra.mxu0 %v451
        %1409 = vmatpush.bf16.msra.mxu0 %v449
        %1410 = vmatpush.bf16.msra.mxu0 %v447
        %1411 = vmatpush.bf16.msra.mxu0 %v445
        %1412 = vmatpush.bf16.msra.mxu0 %v443
        %1413 = vmatpush.bf16.msra.mxu0 %v441
        %1414 = vmatmul.bf16.gmra.mxu0 %v1400
        %v1415 = vpop.f32.mrf.mxu0
        %v1416 = vadd.f32 0.0, %v1415
        %v1417 = vpop.f32.mrf.mxu0
        %v1418 = vadd.f32 0.0, %v1417
        %1419 = vdwg.mxu0
        %1420 = vmatpush.bf16.msra.mxu0 %v471
        %1421 = vmatpush.bf16.msra.mxu0 %v469
        %1422 = vmatpush.bf16.msra.mxu0 %v467
        %1423 = vmatpush.bf16.msra.mxu0 %v465
        %1424 = vmatpush.bf16.msra.mxu0 %v463
        %1425 = vmatpush.bf16.msra.mxu0 %v461
        %1426 = vmatpush.bf16.msra.mxu0 %v459
        %1427 = vmatpush.bf16.msra.mxu0 %v457
        %1428 = vmatmul.bf16.gmra.mxu0 %v1401
        %v1429 = vpop.f32.mrf.mxu0
        %v1430 = vadd.f32 %v1416, %v1429
        %v1431 = vpop.f32.mrf.mxu0
        %v1432 = vadd.f32 %v1418, %v1431
        %1433 = vdwg.mxu0
        %1434 = vmatpush.bf16.msra.mxu0 %v487
        %1435 = vmatpush.bf16.msra.mxu0 %v485
        %1436 = vmatpush.bf16.msra.mxu0 %v483
        %1437 = vmatpush.bf16.msra.mxu0 %v481
        %1438 = vmatpush.bf16.msra.mxu0 %v479
        %1439 = vmatpush.bf16.msra.mxu0 %v477
        %1440 = vmatpush.bf16.msra.mxu0 %v475
        %1441 = vmatpush.bf16.msra.mxu0 %v473
        %1442 = vmatmul.bf16.gmra.mxu0 %v1402
        %v1443 = vpop.f32.mrf.mxu0
        %v1444 = vadd.f32 %v1430, %v1443
        %v1445 = vpop.f32.mrf.mxu0
        %v1446 = vadd.f32 %v1432, %v1445
        %1447 = vdwg.mxu0
        %v1448 = vmax.f32 %v1384, %v1444
        %v1449 = vmax.f32 %v1385, %v1446
        %v1450 = vld [vmem:[%s2] sm:$0x1]
        %v1452 = vperm.slane %v1450, 0
        %v1454 = vadd.f32 %v1448, %v1452
        %v1455 = vadd.f32 %v1449, %v1452
        %v1456 = vmax.f32 %v1454, 0.0
        %v1457 = vmax.f32 %v1455, 0.0
        %v1458 = vpack.c.bf16 %v1457, %v1456
        %v1459 = vld [vmem:[%s3] sm:$0xff]
        %v1460 = vld [vmem:[%s3 + $0x8] sm:$0xff]
        %v1461 = vld [vmem:[%s3 + $0x10] sm:$0xff]
        %v1462 = vld [vmem:[%s3 + $0x18] sm:$0xff]
        %v1463 = vld [vmem:[%s3 + $0x20] sm:$0xff]
        %v1464 = vld [vmem:[%s3 + $0x28] sm:$0xff]
        %v1465 = vld [vmem:[%s3 + $0x30] sm:$0xff]
        %v1466 = vld [vmem:[%s3 + $0x38] sm:$0xff]
        %v1467 = vld [vmem:[%s3 + $0x40] sm:$0xff]
        %v1468 = vld [vmem:[%s3 + $0x48] sm:$0xff]
        %v1469 = vld [vmem:[%s3 + $0x50] sm:$0xff]
        %v1470 = vld [vmem:[%s3 + $0x58] sm:$0xff]
        %v1471 = vld [vmem:[%s3 + $0x60] sm:$0xff]
        %v1472 = vld [vmem:[%s3 + $0x68] sm:$0xff]
        %v1473 = vld [vmem:[%s3 + $0x70] sm:$0xff]
        %v1474 = vld [vmem:[%s3 + $0x78] sm:$0xff]
        %v1475 = vld [vmem:[%s4] sm:$0x3]
        %v1477 = vperm.slane %v1475, 0
        %v1478 = vperm.slane %v1475, 1
        %v1497 = vunpack.c.l.b16 %v1459
        %v1498 = vunpack.c.h.b16 %v1459
        %v1499 = vunpack.c.l.b16 %v1460
        %v1500 = vunpack.c.h.b16 %v1460
        %v1501 = vunpack.c.l.b16 %v1461
        %v1502 = vunpack.c.h.b16 %v1461
        %v1503 = vunpack.c.l.b16 %v1462
        %v1504 = vunpack.c.h.b16 %v1462
        %v1505 = vunpack.c.l.b16 %v1463
        %v1506 = vunpack.c.h.b16 %v1463
        %v1507 = vunpack.c.l.b16 %v1464
        %v1508 = vunpack.c.h.b16 %v1464
        %v1509 = vunpack.c.l.b16 %v1465
        %v1510 = vunpack.c.h.b16 %v1465
        %v1511 = vunpack.c.l.b16 %v1466
        %v1512 = vunpack.c.h.b16 %v1466
        %v1513 = vunpack.c.l.b16 %v1467
        %v1514 = vunpack.c.h.b16 %v1467
        %v1515 = vunpack.c.l.b16 %v1468
        %v1516 = vunpack.c.h.b16 %v1468
        %v1517 = vunpack.c.l.b16 %v1469
        %v1518 = vunpack.c.h.b16 %v1469
        %v1519 = vunpack.c.l.b16 %v1470
        %v1520 = vunpack.c.h.b16 %v1470
        %v1521 = vunpack.c.l.b16 %v1471
        %v1522 = vunpack.c.h.b16 %v1471
        %v1523 = vunpack.c.l.b16 %v1472
        %v1524 = vunpack.c.h.b16 %v1472
        %v1525 = vunpack.c.l.b16 %v1473
        %v1526 = vunpack.c.h.b16 %v1473
        %v1527 = vunpack.c.l.b16 %v1474
        %v1528 = vunpack.c.h.b16 %v1474
        %v1529 = vpack.c.b16 %v1499, %v1497
        %v1530 = vpack.c.b16 %v1500, %v1498
        %v1531 = vpack.c.b16 %v1503, %v1501
        %v1532 = vpack.c.b16 %v1504, %v1502
        %v1533 = vpack.c.b16 %v1507, %v1505
        %v1534 = vpack.c.b16 %v1508, %v1506
        %v1535 = vpack.c.b16 %v1511, %v1509
        %v1536 = vpack.c.b16 %v1512, %v1510
        %v1537 = vpack.c.b16 %v1515, %v1513
        %v1538 = vpack.c.b16 %v1516, %v1514
        %v1539 = vpack.c.b16 %v1519, %v1517
        %v1540 = vpack.c.b16 %v1520, %v1518
        %v1541 = vpack.c.b16 %v1523, %v1521
        %v1542 = vpack.c.b16 %v1524, %v1522
        %v1543 = vpack.c.b16 %v1527, %v1525
        %v1544 = vpack.c.b16 %v1528, %v1526
        %1561 = vmatpush.bf16.msra.mxu0 %v1543
        %1562 = vmatpush.bf16.msra.mxu0 %v1541
        %1563 = vmatpush.bf16.msra.mxu0 %v1539
        %1564 = vmatpush.bf16.msra.mxu0 %v1537
        %1565 = vmatpush.bf16.msra.mxu0 %v1535
        %1566 = vmatpush.bf16.msra.mxu0 %v1533
        %1567 = vmatpush.bf16.msra.mxu0 %v1531
        %1568 = vmatpush.bf16.msra.mxu0 %v1529
        %1569 = vmatmul.bf16.gmra.mxu0 %v1458
        %v1570 = vpop.f32.mrf.mxu0
        %v1571 = vadd.f32 %v1477, %v1570
        %v1572 = vpop.f32.mrf.mxu0
        %v1573 = vadd.f32 %v1477, %v1572
        %1574 = vdwg.mxu0
        %1575 = vmatpush.bf16.msra.mxu0 %v1544
        %1576 = vmatpush.bf16.msra.mxu0 %v1542
        %1577 = vmatpush.bf16.msra.mxu0 %v1540
        %1578 = vmatpush.bf16.msra.mxu0 %v1538
        %1579 = vmatpush.bf16.msra.mxu0 %v1536
        %1580 = vmatpush.bf16.msra.mxu0 %v1534
        %1581 = vmatpush.bf16.msra.mxu0 %v1532
        %1582 = vmatpush.bf16.msra.mxu0 %v1530
        %1583 = vmatmul.bf16.gmra.mxu0 %v1458
        %v1584 = vpop.f32.mrf.mxu0
        %v1585 = vadd.f32 %v1478, %v1584
        %v1586 = vpop.f32.mrf.mxu0
        %v1587 = vadd.f32 %v1478, %v1586
        %1588 = vdwg.mxu0
        %v1589 = vmax.f32 %v1571, 0.0
        %v1590 = vmax.f32 %v1573, 0.0
        %v1591 = vxor.u32 %v1585, 2147483648
        %v1592 = vxor.u32 %v1587, 2147483648
        %v1593 = vmul.f32 %v1591, 1.442695
        %v1594 = vpow.pop %v1593
        %v1595 = vmul.f32 %v1592, 1.442695
        %v1596 = vpow.pop %v1595
        %v1597 = vadd.f32 %v1594, 1.0
        %v1598 = vadd.f32 %v1596, 1.0
        %v1599 = vrcp.pop %v1597
        %v1600 = vmul.f32 %v1597, %v1599
        %v1601 = vsub.f32 1.0, %v1600
        %v1602 = vmul.f32 %v1599, %v1601
        %v1603 = vadd.f32 %v1599, %v1602
        %vm1604 = vweird.f32 %v1597
        %vm1605 = vweird.f32 %v1599
        %vm1606 = vmor %vm1604, %vm1605
        %v1607 = vsel %vm1606, %v1599, %v1603
        %v1608 = vand.u32 2147483647, %v1597
        %vm1609 = vcmp.eq.f32.partialorder %v1608, 8.507059e+37
        %v1610 = vand.u32 %v1597, 2147483648
        %v1611 = vor.u32 1.1754944e-38, %v1610
        %v1612 = vsel %vm1609, %v1611, %v1607
        %v1613 = vmul.f32 1.0, %v1612
        %v1614 = vrcp.pop %v1598
        %v1615 = vmul.f32 %v1598, %v1614
        %v1616 = vsub.f32 1.0, %v1615
        %v1617 = vmul.f32 %v1614, %v1616
        %v1618 = vadd.f32 %v1614, %v1617
        %vm1619 = vweird.f32 %v1598
        %vm1620 = vweird.f32 %v1614
        %vm1621 = vmor %vm1619, %vm1620
        %v1622 = vsel %vm1621, %v1614, %v1618
        %v1623 = vand.u32 2147483647, %v1598
        %vm1624 = vcmp.eq.f32.partialorder %v1623, 8.507059e+37
        %v1625 = vand.u32 %v1598, 2147483648
        %v1626 = vor.u32 1.1754944e-38, %v1625
        %v1627 = vsel %vm1624, %v1626, %v1622
        %v1628 = vmul.f32 1.0, %v1627
        %v1629 = vmul.f32 %v1613, %v1589
        %v1630 = vmul.f32 %v1628, %v1590
        %v1631 = vsub.f32 1.0, %v1613
        %v1632 = vsub.f32 1.0, %v1628
        %v1633 = vmul.f32 %v1631, %v1456
        %v1634 = vmul.f32 %v1632, %v1457
        %v1635 = vadd.f32 %v1629, %v1633
        %v1636 = vadd.f32 %v1630, %v1634
        %v1637 = vpack.c.bf16 %v1635, %v1635
        %v1638 = vpack.c.bf16 %v1636, %v1636
        %1639 = vst [vmem:[%s220] sm:$0xf] %v1637
        %1640 = vst [vmem:[%s220 + $0x4] sm:$0xf] %v1638
        %s1641 = sand.u32 %s137, 1
        %s1642 = scalar_lea.sflag [#allocation3], %s1641
        %s1643 = sand.u32 %s137, 1
        %s1644 = smul.addr %s1643, 8
        %s1645 = scalar_lea.vmem [#allocation2], %s1644
        // Predicated region
        $region41: #{_forward_impl.1} parent=39 // pred_check
          %p1646 = pneg %p147
        $region42: #{_forward_impl.1} parent=39 // pred_check_branch
          %1648 = sbr.rel (%p1646) target = $region44
        $region43: #{_forward_impl.1} parent=39 // pred_region
          %s1649 = smul.u32 2, %s19
          %1651 = vsyncadd %s1642, 0
          %s1652 = smul.addr %s1649, 4
          %s1653 = scalar_lea.hbm %s5, %s1652
          %s1654 = sshll.u32 %s1645, 4
          %s1655 = int_to_ptr.vmem [resolvable:$true] %s1654
          %s1656 = sshll.u32 %s1653, 4
          %s1657 = int_to_ptr.hbm [resolvable:$true] %s1656
          %1662 = dma.vmem_to_hbm [thread:$0]  %s1655, 128, %s1657, %s1642, 64, 64, 4
        $region44: #{_forward_impl.1} parent=39 // pred_fallthru
          _
      $region40: #{_forward_impl.1} parent=5 // pred_fallthru
        _
      %p1663 = scmp.le.s32.totalorder 2, %s14
      // Predicated region
      $region45: #{_forward_impl.1} parent=5 // pred_check
        %p1664 = pneg %p1663
      $region46: #{_forward_impl.1} parent=5 // pred_check_branch
        %1666 = sbr.rel (%p1664) target = $region48
      $region47: #{_forward_impl.1} parent=5 // pred_region
        %s1667 = ssub.s32 %s14, 2
        // Predicated region
        $region49: #{_forward_impl.1} parent=47 // pred_check
          %p1668 = pneg %p153
        $region50: #{_forward_impl.1} parent=47 // pred_check_branch
          %1670 = sbr.rel (%p1668) target = $region52
        $region51: #{_forward_impl.1} parent=47 // pred_region
          %s1671 = sand.u32 %s138, 1
          %s1672 = scalar_lea.sflag [#allocation3], %s1671
          %s1673 = sand.u32 %s138, 1
          %s1674 = smul.addr %s1673, 8
          %s1675 = scalar_lea.vmem [#allocation2], %s1674
          %1677 = dma.done %s1672, 128
        $region52: #{_forward_impl.1} parent=47 // pred_fallthru
          _
      $region48: #{_forward_impl.1} parent=5 // pred_fallthru
        _
    $region6: #{_forward_impl.1} parent=1 // loop_footer
      %s18 = sadd.s32 1, %s14
    $region7: #{_forward_impl.1} parent=1 // loop_footer_branch
      %13 = sbr.rel target = $region3
    $region8: #{_forward_impl.1} parent=1 // loop_exit
      _
    %1678 = vsyncpa [#allocation3], 1
    %s1679 = scalar_lea.sflag [#allocation3], 1
    %1680 = vsyncpa %s1679, 1

</llo_original>
